<compile_context>
chip_gen: v5e
topology: v5e:2x2
jax: 0.10.0
libtpu: 0.0.40
codegen_flags: <defaults>
</compile_context>

<pallas_src>
import jax
import jax.numpy as jnp
from jax.experimental import pallas as pl
from jax.experimental.pallas import tpu as pltpu


D_IMG, D_TXT, D_LAB = 2048, 768, 10
D_BR_IMG, D_BR_TXT, D_BR_LAB = 512, 256, 64
D_HID, D_OUT = 128, 1


# ---------------------------------------------------------------------------
# Pallas kernel: fused (folded) forward pass for one batch tile
# ---------------------------------------------------------------------------
def fusion_kernel(
    x_img_ref, x_txt_ref, x_lab_ref,
    w_img_ref, w_txt_ref, w_lab_ref, b_eff_ref,
    w2_row_ref, b2_ref,
    out_ref,
):
    # Folded classifier layer 1 (three MXU matmuls, f32 accumulation).
    # Image/text effective weights are streamed in bf16; activations are cast
    # on the VPU so the MXU runs the standard bf16 x bf16 -> f32 path.
    h = (jnp.dot(x_img_ref[...].astype(jnp.bfloat16), w_img_ref[...],
                 preferred_element_type=jnp.float32)
         + jnp.dot(x_txt_ref[...].astype(jnp.bfloat16), w_txt_ref[...],
                   preferred_element_type=jnp.float32)
         # lab branch is tiny (K=10, ~5 KB of weights) -> keep it f32.
         + jnp.dot(x_lab_ref[...], w_lab_ref[...],
                   preferred_element_type=jnp.float32)
         + b_eff_ref[...])                                     # [TB, 128]
    h = jnp.maximum(h, 0.0)                                    # ReLU

    # Final Linear(128 -> 1): lane-dense multiply + row reduction (VPU/XLU)
    # instead of an N=1 MXU matmul with a masked 1-lane result.
    out_ref[...] = (jnp.sum(h * w2_row_ref[...], axis=-1, keepdims=True)
                    + b2_ref[...])                             # [TB, 1]


# ---------------------------------------------------------------------------
# One-time parameter preparation (folding + bf16 cast) — NOT per call
# ---------------------------------------------------------------------------
def prepare_params(params):
    (w_img, b_img, w_txt, b_txt, w_lab, b_lab, w1, b1, w2, b2) = params

    # Split W1 (832 x 128) into its concat row-blocks once.
    w1_img = w1[:D_BR_IMG, :]
    w1_txt = w1[D_BR_IMG:D_BR_IMG + D_BR_TXT, :]
    w1_lab = w1[D_BR_IMG + D_BR_TXT:, :]

    # Fold branch projections into classifier layer 1 (f32 math, then cast).
    w_img_eff = (w_img @ w1_img).astype(jnp.bfloat16)          # [2048, 128]
    w_txt_eff = (w_txt @ w1_txt).astype(jnp.bfloat16)          # [768, 128]
    w_lab_eff = (w_lab @ w1_lab).astype(jnp.float32)           # [10, 128] (tiny)
    b_eff = (b_img @ w1_img + b_txt @ w1_txt + b_lab @ w1_lab + b1
             ).reshape(1, -1).astype(jnp.float32)              # [1, 128]

    w2_row = w2.reshape(1, -1).astype(jnp.float32)             # [1, 128]
    b2_row = b2.reshape(1, -1).astype(jnp.float32)             # [1, 1]
    return (w_img_eff, w_txt_eff, w_lab_eff, b_eff, w2_row, b2_row)


# ---------------------------------------------------------------------------
# Wrapper
# ---------------------------------------------------------------------------
def fusion_forward(x_img, x_txt, x_lab, folded_params, *, block_b=None):
    B = x_img.shape[0]
    (w_img_eff, w_txt_eff, w_lab_eff, b_eff, w2_row, b2_row) = folded_params

    if block_b is None:
        # 256-row tiles fill the v6e/v7x MXU; 128 fits v5e; otherwise take the
        # whole (small) batch in one shot.
        block_b = B
        for tb in (256, 128):
            if B % tb == 0:
                block_b = tb
                break
    grid = (B // block_b,)

    def act_spec(k):
        return pl.BlockSpec((block_b, k), lambda i: (i, 0))

    def resident(a):  # weights/biases: constant block -> stay VMEM-resident
        return pl.BlockSpec(a.shape, lambda i: (0, 0))

    return pl.pallas_call(
        fusion_kernel,
        out_shape=jax.ShapeDtypeStruct((B, D_OUT), jnp.float32),
        grid=grid,
        in_specs=[
            act_spec(D_IMG), act_spec(D_TXT), act_spec(D_LAB),
            resident(w_img_eff), resident(w_txt_eff), resident(w_lab_eff),
            resident(b_eff), resident(w2_row), resident(b2_row),
        ],
        out_specs=pl.BlockSpec((block_b, D_OUT), lambda i: (i, 0)),
        compiler_params=pltpu.CompilerParams(
            dimension_semantics=("parallel",)),
    )(x_img, x_txt, x_lab,
      w_img_eff, w_txt_eff, w_lab_eff, b_eff, w2_row, b2_row)


# ---------------------------------------------------------------------------
# Deterministic parameter init (PyTorch-style uniform(-1/sqrt(fan_in), ...))
# ---------------------------------------------------------------------------
def init_params(key):
    def linear(key, fan_in, fan_out):
        k_w, k_b = jax.random.split(key)
        bound = 1.0 / jnp.sqrt(fan_in)
        w = jax.random.uniform(k_w, (fan_in, fan_out), jnp.float32, -bound, bound)
        b = jax.random.uniform(k_b, (fan_out,), jnp.float32, -bound, bound)
        return w, b

    keys = jax.random.split(key, 5)
    w_img, b_img = linear(keys[0], D_IMG, D_BR_IMG)
    w_txt, b_txt = linear(keys[1], D_TXT, D_BR_TXT)
    w_lab, b_lab = linear(keys[2], D_LAB, D_BR_LAB)
    w1, b1 = linear(keys[3], D_BR_IMG + D_BR_TXT + D_BR_LAB, D_HID)
    w2, b2 = linear(keys[4], D_HID, D_OUT)
    return (w_img, b_img, w_txt, b_txt, w_lab, b_lab, w1, b1, w2, b2)


def reference_forward(x_img, x_txt, x_lab, params):
    (w_img, b_img, w_txt, b_txt, w_lab, b_lab, w1, b1, w2, b2) = params
    x1 = x_img @ w_img + b_img
    x2 = x_txt @ w_txt + b_txt
    x3 = x_lab @ w_lab + b_lab
    x = jnp.concatenate([x1, x2, x3], axis=1)
    h = jnp.maximum(x @ w1 + b1, 0.0)
    return h @ w2 + b2


if __name__ == "__main__":
    key = jax.random.PRNGKey(0)
    k_p, k_img, k_txt, k_lab = jax.random.split(key, 4)

    params = init_params(k_p)
    folded = prepare_params(params)          # folding + bf16 cast happens once

    B = 8
    x_img = jax.random.normal(k_img, (B, D_IMG), jnp.float32)
    x_txt = jax.random.normal(k_txt, (B, D_TXT), jnp.float32)
    x_lab = jax.random.normal(k_lab, (B, D_LAB), jnp.float32)

    out = fusion_forward(x_img, x_txt, x_lab, folded)
    out = jax.block_until_ready(out)

    ref = reference_forward(x_img, x_txt, x_lab, params)
    assert out.shape == (B, D_OUT)
    # Folding + bf16 weight streaming reassociate/round differently than the
    # unfolded f32 reference; verify at a correspondingly looser tolerance.
    max_err = jnp.max(jnp.abs(out - ref))
    assert jnp.allclose(out, ref, atol=2e-2, rtol=2e-2), (
        f"mismatch vs reference: max abs err {max_err}")

    print("KERNEL_OK")
</pallas_src>

<mosaic_0001>
module attributes {stable_mosaic.version = 11 : i64} {
  func.func @fusion_kernel(%arg0: i32, %arg1: memref<8x2048xf32, #tpu.memory_space<vmem>>, %arg2: memref<8x768xf32, #tpu.memory_space<vmem>>, %arg3: memref<8x10xf32, #tpu.memory_space<vmem>>, %arg4: memref<2048x128xbf16, #tpu.memory_space<vmem>>, %arg5: memref<768x128xbf16, #tpu.memory_space<vmem>>, %arg6: memref<10x128xf32, #tpu.memory_space<vmem>>, %arg7: memref<1x128xf32, #tpu.memory_space<vmem>>, %arg8: memref<1x128xf32, #tpu.memory_space<vmem>>, %arg9: memref<1x1xf32, #tpu.memory_space<vmem>>, %arg10: memref<8x1xf32, #tpu.memory_space<vmem>>) attributes {dimension_semantics = [#tpu.dimension_semantics<parallel>], iteration_bounds = array<i64: 1>, scalar_prefetch = 0 : i64, scratch_operands = 0 : i64, tpu.core_type = #tpu.core_type<tc>, window_params = [{transform_indices = @transform_0, window_bounds = array<i64: 8, 2048>}, {transform_indices = @transform_1, window_bounds = array<i64: 8, 768>}, {transform_indices = @transform_2, window_bounds = array<i64: 8, 10>}, {pipeline_mode = #tpu.pipeline_mode<synchronous>, transform_indices = @transform_3, window_bounds = array<i64: 2048, 128>}, {pipeline_mode = #tpu.pipeline_mode<synchronous>, transform_indices = @transform_4, window_bounds = array<i64: 768, 128>}, {pipeline_mode = #tpu.pipeline_mode<synchronous>, transform_indices = @transform_5, window_bounds = array<i64: 10, 128>}, {pipeline_mode = #tpu.pipeline_mode<synchronous>, transform_indices = @transform_6, window_bounds = array<i64: 1, 128>}, {pipeline_mode = #tpu.pipeline_mode<synchronous>, transform_indices = @transform_7, window_bounds = array<i64: 1, 128>}, {pipeline_mode = #tpu.pipeline_mode<synchronous>, transform_indices = @transform_8, window_bounds = array<i64: 1, 1>}, {transform_indices = @transform_9, window_bounds = array<i64: 8, 1>}]} {
    %c0 = arith.constant 0 : index
    %c0_0 = arith.constant 0 : index
    %0 = vector.load %arg1[%c0, %c0_0] : memref<8x2048xf32, #tpu.memory_space<vmem>>, vector<8x2048xf32>
    %1 = arith.truncf %0 : vector<8x2048xf32> to vector<8x2048xbf16>
    %c0_1 = arith.constant 0 : index
    %c0_2 = arith.constant 0 : index
    %2 = vector.load %arg4[%c0_1, %c0_2] : memref<2048x128xbf16, #tpu.memory_space<vmem>>, vector<2048x128xbf16>
    %cst = arith.constant dense<0.000000e+00> : vector<8x128xf32>
    %3 = tpu.matmul %1, %2, %cst {dimension_numbers = #tpu.dot_dimension_numbers<[1], [0], [0], [1], [0, 0, 1, 1], [], []>} : vector<8x2048xbf16>, vector<2048x128xbf16>, vector<8x128xf32> -> vector<8x128xf32>
    %c0_3 = arith.constant 0 : index
    %c0_4 = arith.constant 0 : index
    %4 = vector.load %arg2[%c0_3, %c0_4] : memref<8x768xf32, #tpu.memory_space<vmem>>, vector<8x768xf32>
    %5 = arith.truncf %4 : vector<8x768xf32> to vector<8x768xbf16>
    %c0_5 = arith.constant 0 : index
    %c0_6 = arith.constant 0 : index
    %6 = vector.load %arg5[%c0_5, %c0_6] : memref<768x128xbf16, #tpu.memory_space<vmem>>, vector<768x128xbf16>
    %cst_7 = arith.constant dense<0.000000e+00> : vector<8x128xf32>
    %7 = tpu.matmul %5, %6, %cst_7 {dimension_numbers = #tpu.dot_dimension_numbers<[1], [0], [0], [1], [0, 0, 1, 1], [], []>} : vector<8x768xbf16>, vector<768x128xbf16>, vector<8x128xf32> -> vector<8x128xf32>
    %8 = arith.addf %3, %7 : vector<8x128xf32>
    %c0_8 = arith.constant 0 : index
    %c0_9 = arith.constant 0 : index
    %9 = vector.load %arg3[%c0_8, %c0_9] : memref<8x10xf32, #tpu.memory_space<vmem>>, vector<8x10xf32>
    %c0_10 = arith.constant 0 : index
    %c0_11 = arith.constant 0 : index
    %10 = vector.load %arg6[%c0_10, %c0_11] : memref<10x128xf32, #tpu.memory_space<vmem>>, vector<10x128xf32>
    %cst_12 = arith.constant dense<0.000000e+00> : vector<8x128xf32>
    %11 = tpu.matmul %9, %10, %cst_12 {dimension_numbers = #tpu.dot_dimension_numbers<[1], [0], [0], [1], [0, 0, 1, 1], [], []>} : vector<8x10xf32>, vector<10x128xf32>, vector<8x128xf32> -> vector<8x128xf32>
    %12 = arith.addf %8, %11 : vector<8x128xf32>
    %c0_13 = arith.constant 0 : index
    %c0_14 = arith.constant 0 : index
    %13 = vector.load %arg7[%c0_13, %c0_14] : memref<1x128xf32, #tpu.memory_space<vmem>>, vector<1x128xf32>
    %14 = vector.broadcast %13 : vector<1x128xf32> to vector<8x128xf32>
    %15 = arith.addf %12, %14 : vector<8x128xf32>
    %cst_15 = arith.constant 0.000000e+00 : f32
    %16 = vector.broadcast %cst_15 : f32 to vector<8x128xf32>
    %17 = arith.maximumf %15, %16 : vector<8x128xf32>
    %c0_16 = arith.constant 0 : index
    %c0_17 = arith.constant 0 : index
    %18 = vector.load %arg8[%c0_16, %c0_17] : memref<1x128xf32, #tpu.memory_space<vmem>>, vector<1x128xf32>
    %19 = vector.broadcast %18 : vector<1x128xf32> to vector<8x128xf32>
    %20 = arith.mulf %17, %19 : vector<8x128xf32>
    %cst_18 = arith.constant dense<0.000000e+00> : vector<8xf32>
    %21 = vector.multi_reduction <add>, %20, %cst_18 [1] : vector<8x128xf32> to vector<8xf32>
    %22 = vector.shape_cast %21 : vector<8xf32> to vector<8x1xf32>
    %c0_19 = arith.constant 0 : index
    %c0_20 = arith.constant 0 : index
    %23 = vector.load %arg9[%c0_19, %c0_20] : memref<1x1xf32, #tpu.memory_space<vmem>>, vector<1x1xf32>
    %24 = vector.broadcast %23 : vector<1x1xf32> to vector<8x1xf32>
    %25 = arith.addf %22, %24 : vector<8x1xf32>
    %c0_21 = arith.constant 0 : index
    %c0_22 = arith.constant 0 : index
    %26 = vector.load %arg10[%c0_21, %c0_22] : memref<8x1xf32, #tpu.memory_space<vmem>>, vector<8x1xf32>
    tpu.vector_store %arg10[%c0_21, %c0_22], %25 {strides = array<i32>} : memref<8x1xf32, #tpu.memory_space<vmem>>, vector<8x1xf32>,
    return
  }
  func.func @transform_0(%arg0: i32) -> (i32, i32) {
    %c0_i32 = arith.constant 0 : i32
    %c0_i32_0 = arith.constant 0 : i32
    return %arg0, %c0_i32 : i32, i32
  }
  func.func @transform_1(%arg0: i32) -> (i32, i32) {
    %c0_i32 = arith.constant 0 : i32
    %c0_i32_0 = arith.constant 0 : i32
    return %arg0, %c0_i32 : i32, i32
  }
  func.func @transform_2(%arg0: i32) -> (i32, i32) {
    %c0_i32 = arith.constant 0 : i32
    %c0_i32_0 = arith.constant 0 : i32
    return %arg0, %c0_i32 : i32, i32
  }
  func.func @transform_3(%arg0: i32) -> (i32, i32) {
    %c0_i32 = arith.constant 0 : i32
    %c0_i32_0 = arith.constant 0 : i32
    %c0_i32_1 = arith.constant 0 : i32
    return %c0_i32, %c0_i32_0 : i32, i32
  }
  func.func @transform_4(%arg0: i32) -> (i32, i32) {
    %c0_i32 = arith.constant 0 : i32
    %c0_i32_0 = arith.constant 0 : i32
    %c0_i32_1 = arith.constant 0 : i32
    return %c0_i32, %c0_i32_0 : i32, i32
  }
  func.func @transform_5(%arg0: i32) -> (i32, i32) {
    %c0_i32 = arith.constant 0 : i32
    %c0_i32_0 = arith.constant 0 : i32
    %c0_i32_1 = arith.constant 0 : i32
    return %c0_i32, %c0_i32_0 : i32, i32
  }
  func.func @transform_6(%arg0: i32) -> (i32, i32) {
    %c0_i32 = arith.constant 0 : i32
    %c0_i32_0 = arith.constant 0 : i32
    %c0_i32_1 = arith.constant 0 : i32
    return %c0_i32, %c0_i32_0 : i32, i32
  }
  func.func @transform_7(%arg0: i32) -> (i32, i32) {
    %c0_i32 = arith.constant 0 : i32
    %c0_i32_0 = arith.constant 0 : i32
    %c0_i32_1 = arith.constant 0 : i32
    return %c0_i32, %c0_i32_0 : i32, i32
  }
  func.func @transform_8(%arg0: i32) -> (i32, i32) {
    %c0_i32 = arith.constant 0 : i32
    %c0_i32_0 = arith.constant 0 : i32
    %c0_i32_1 = arith.constant 0 : i32
    return %c0_i32, %c0_i32_0 : i32, i32
  }
  func.func @transform_9(%arg0: i32) -> (i32, i32) {
    %c0_i32 = arith.constant 0 : i32
    %c0_i32_0 = arith.constant 0 : i32
    return %arg0, %c0_i32 : i32, i32
  }
}

</mosaic_0001>

<llo_original>
// kernel: tpu_custom_call.1
$region0: #{tpu_custom_call.1}
  #allocation0 [shape = 'u32[]', space=smem, size = 0x4, offset = 0x4, fixed_abs, tag = 'smem constant byte address 0x4 - core index']
  #allocation1 [shape = 'u32[72,128]{1,0:T(1,128)}', space=vmem, size = 0x9000, scoped, tag = 'internal scratch']
  #allocation2 [shape = 'f32[1,1]{1,0:T(1,128)S(1)}', space=vmem, size = 0x200, scoped, tag = 'scoped memory for tpu_custom_call.1']
  %s0 = inlined_call_operand.hbm [shape: f32[8,2048], index: 0, kind: input, shape index: {}]
  %s1 = inlined_call_operand.hbm [shape: f32[8,768], index: 1, kind: input, shape index: {}]
  %s2 = inlined_call_operand.hbm [shape: f32[8,10], index: 2, kind: input, shape index: {}]
  %s3 = inlined_call_operand.hbm [shape: bf16[2048,128], index: 3, kind: input, shape index: {}]
  %s4 = inlined_call_operand.hbm [shape: bf16[768,128], index: 4, kind: input, shape index: {}]
  %s5 = inlined_call_operand.hbm [shape: f32[10,128], index: 5, kind: input, shape index: {}]
  %s6 = inlined_call_operand.vmem [shape: f32[1,128], index: 6, kind: input, shape index: {}]
  %s7 = inlined_call_operand.vmem [shape: f32[1,128], index: 7, kind: input, shape index: {}]
  %s8 = inlined_call_operand.<no memory space> [shape: f32[1,1], index: 8, kind: input, shape index: {}]
  %s9 = inlined_call_operand.vmem [shape: f32[8,1], index: 9, kind: output, shape index: {}]
  %s10 = sld [smem:[#allocation0]]
  $region70: #{tpu_custom_call.1} parent=0
    _
  %s12 = ssub.s32 1, %s10
  %s13 = scalar_select 0, %s12, %s10
  %v14 = vstv %s8
  %15 = vst [vmem:[#allocation2] sm:$0x1] %v14
  $region1: #{tpu_custom_call.1} parent=0
    #allocation3 [shape = 'u8[65536]{0}', space=vmem, size = 0x10000, scoped, tag = 'input window, operand 0, single buffered']
    #allocation4 [shape = 's32[1]{0}', space=sflag, size = 0x4, scoped, tag = 'scoped memory for tpu_custom_call.1']
    #allocation5 [shape = 'u8[24576]{0}', space=vmem, size = 0x6000, scoped, tag = 'input window, operand 1, single buffered']
    #allocation6 [shape = 's32[1]{0}', space=sflag, size = 0x4, scoped, tag = 'scoped memory for tpu_custom_call.1']
    #allocation7 [shape = 'u8[4096]{0}', space=vmem, size = 0x1000, scoped, tag = 'input window, operand 2, single buffered']
    #allocation8 [shape = 'u8[524288]{0}', space=vmem, size = 0x80000, scoped, tag = 'input window, operand 3, single buffered']
    #allocation9 [shape = 's32[1]{0}', space=sflag, size = 0x4, scoped, tag = 'scoped memory for tpu_custom_call.1']
    #allocation10 [shape = 'u8[196608]{0}', space=vmem, size = 0x30000, scoped, tag = 'input window, operand 4, single buffered']
    #allocation11 [shape = 'u8[8192]{0}', space=vmem, size = 0x2000, scoped, tag = 'input window, operand 5, single buffered']
    #allocation12 [shape = 's32[1]{0}', space=sflag, size = 0x4, scoped, tag = 'scoped memory for tpu_custom_call.1']
    %16 = vsyncpa [#allocation4], 0
    %17 = vsyncpa [#allocation6], 0
    %18 = vsyncpa [#allocation9], 0
    %19 = vsyncpa [#allocation12], 0
    // Predicated region
    $region2: #{tpu_custom_call.1} parent=1 // pred_check
      _
    $region3: #{tpu_custom_call.1} parent=1 // pred_check_branch
      %21 = sbr.rel (0) target = $region5
    $region4: #{tpu_custom_call.1} parent=1 // pred_region
      %23 = vsyncadd [#allocation4], 0
      %s25 = sshll.u32 %s0, 4
      %s26 = int_to_ptr.hbm [resolvable:$true] %s25
      %s27 = sshll.u32 [#allocation3], 4
      %s28 = int_to_ptr.vmem [resolvable:$true] %s27
      %30 = dma.hbm_to_vmem [thread:$0]  %s26, 2048, %s28, [#allocation4]
    $region5: #{tpu_custom_call.1} parent=1 // pred_fallthru
      _
    // Predicated region
    $region6: #{tpu_custom_call.1} parent=1 // pred_check
      _
    $region7: #{tpu_custom_call.1} parent=1 // pred_check_branch
      %32 = sbr.rel (0) target = $region9
    $region8: #{tpu_custom_call.1} parent=1 // pred_region
      %34 = vsyncadd [#allocation6], 0
      %s36 = sshll.u32 %s1, 4
      %s37 = int_to_ptr.hbm [resolvable:$true] %s36
      %s38 = sshll.u32 [#allocation5], 4
      %s39 = int_to_ptr.vmem [resolvable:$true] %s38
      %41 = dma.hbm_to_vmem [thread:$0]  %s37, 768, %s39, [#allocation6]
    $region9: #{tpu_custom_call.1} parent=1 // pred_fallthru
      _
    // Predicated region
    $region10: #{tpu_custom_call.1} parent=1 // pred_check
      _
    $region11: #{tpu_custom_call.1} parent=1 // pred_check_branch
      %43 = sbr.rel (0) target = $region13
    $region12: #{tpu_custom_call.1} parent=1 // pred_region
      %45 = vsyncadd [#allocation6], 0
      %s47 = sshll.u32 %s2, 4
      %s48 = int_to_ptr.hbm [resolvable:$true] %s47
      %s49 = sshll.u32 [#allocation7], 4
      %s50 = int_to_ptr.vmem [resolvable:$true] %s49
      %52 = dma.hbm_to_vmem [thread:$0]  %s48, 128, %s50, [#allocation6]
    $region13: #{tpu_custom_call.1} parent=1 // pred_fallthru
      _
    // Predicated region
    $region14: #{tpu_custom_call.1} parent=1 // pred_check
      _
    $region15: #{tpu_custom_call.1} parent=1 // pred_check_branch
      %54 = sbr.rel (0) target = $region17
    $region16: #{tpu_custom_call.1} parent=1 // pred_region
      %56 = vsyncadd [#allocation9], 0
      %s57 = sshll.u32 %s3, 4
      %s58 = int_to_ptr.hbm [resolvable:$true] %s57
      %s59 = sshll.u32 [#allocation8], 4
      %s60 = int_to_ptr.vmem [resolvable:$true] %s59
      %65 = dma.hbm_to_vmem [thread:$0]  %s58, 16384, %s60, [#allocation9], 64, 64, 4
    $region17: #{tpu_custom_call.1} parent=1 // pred_fallthru
      _
    // Predicated region
    $region18: #{tpu_custom_call.1} parent=1 // pred_check
      _
    $region19: #{tpu_custom_call.1} parent=1 // pred_check_branch
      %67 = sbr.rel (0) target = $region21
    $region20: #{tpu_custom_call.1} parent=1 // pred_region
      %69 = vsyncadd [#allocation9], 0
      %s70 = sshll.u32 %s4, 4
      %s71 = int_to_ptr.hbm [resolvable:$true] %s70
      %s72 = sshll.u32 [#allocation10], 4
      %s73 = int_to_ptr.vmem [resolvable:$true] %s72
      %78 = dma.hbm_to_vmem [thread:$0]  %s71, 6144, %s73, [#allocation9], 64, 64, 4
    $region21: #{tpu_custom_call.1} parent=1 // pred_fallthru
      _
    // Predicated region
    $region22: #{tpu_custom_call.1} parent=1 // pred_check
      _
    $region23: #{tpu_custom_call.1} parent=1 // pred_check_branch
      %80 = sbr.rel (0) target = $region25
    $region24: #{tpu_custom_call.1} parent=1 // pred_region
      %82 = vsyncadd [#allocation12], 0
      %s83 = sshll.u32 %s5, 4
      %s84 = int_to_ptr.hbm [resolvable:$true] %s83
      %s85 = sshll.u32 [#allocation11], 4
      %s86 = int_to_ptr.vmem [resolvable:$true] %s85
      %91 = dma.hbm_to_vmem [thread:$0]  %s84, 256, %s86, [#allocation12], 128, 128, 8
    $region25: #{tpu_custom_call.1} parent=1 // pred_fallthru
      _
    // Predicated region
    $region26: #{tpu_custom_call.1} parent=1 // pred_check
      _
    $region27: #{tpu_custom_call.1} parent=1 // pred_check_branch
      %93 = sbr.rel (0) target = $region29
    $region28: #{tpu_custom_call.1} parent=1 // pred_region
      _
    $region29: #{tpu_custom_call.1} parent=1 // pred_fallthru
      _
    // Predicated region
    $region30: #{tpu_custom_call.1} parent=1 // pred_check
      _
    $region31: #{tpu_custom_call.1} parent=1 // pred_check_branch
      %95 = sbr.rel (0) target = $region33
    $region32: #{tpu_custom_call.1} parent=1 // pred_region
      _
    $region33: #{tpu_custom_call.1} parent=1 // pred_fallthru
      _
    // Predicated region
    $region34: #{tpu_custom_call.1} parent=1 // pred_check
      _
    $region35: #{tpu_custom_call.1} parent=1 // pred_check_branch
      %97 = sbr.rel (0) target = $region37
    $region36: #{tpu_custom_call.1} parent=1 // pred_region
      _
    $region37: #{tpu_custom_call.1} parent=1 // pred_fallthru
      _
    // Predicated region
    $region38: #{tpu_custom_call.1} parent=1 // pred_check
      _
    $region39: #{tpu_custom_call.1} parent=1 // pred_check_branch
      %99 = sbr.rel (0) target = $region41
    $region40: #{tpu_custom_call.1} parent=1 // pred_region
      %101 = dma.done [#allocation4], 2048
    $region41: #{tpu_custom_call.1} parent=1 // pred_fallthru
      _
    // Predicated region
    $region42: #{tpu_custom_call.1} parent=1 // pred_check
      _
    $region43: #{tpu_custom_call.1} parent=1 // pred_check_branch
      %103 = sbr.rel (0) target = $region45
    $region44: #{tpu_custom_call.1} parent=1 // pred_region
      %105 = dma.done [#allocation6], 768
    $region45: #{tpu_custom_call.1} parent=1 // pred_fallthru
      _
    // Predicated region
    $region46: #{tpu_custom_call.1} parent=1 // pred_check
      _
    $region47: #{tpu_custom_call.1} parent=1 // pred_check_branch
      %107 = sbr.rel (0) target = $region49
    $region48: #{tpu_custom_call.1} parent=1 // pred_region
      %109 = dma.done [#allocation6], 128
    $region49: #{tpu_custom_call.1} parent=1 // pred_fallthru
      _
    // Predicated region
    $region50: #{tpu_custom_call.1} parent=1 // pred_check
      _
    $region51: #{tpu_custom_call.1} parent=1 // pred_check_branch
      %111 = sbr.rel (0) target = $region53
    $region52: #{tpu_custom_call.1} parent=1 // pred_region
      %113 = dma.done [#allocation9], 16384
    $region53: #{tpu_custom_call.1} parent=1 // pred_fallthru
      _
    // Predicated region
    $region54: #{tpu_custom_call.1} parent=1 // pred_check
      _
    $region55: #{tpu_custom_call.1} parent=1 // pred_check_branch
      %115 = sbr.rel (0) target = $region57
    $region56: #{tpu_custom_call.1} parent=1 // pred_region
      %117 = dma.done [#allocation9], 6144
    $region57: #{tpu_custom_call.1} parent=1 // pred_fallthru
      _
    // Predicated region
    $region58: #{tpu_custom_call.1} parent=1 // pred_check
      _
    $region59: #{tpu_custom_call.1} parent=1 // pred_check_branch
      %119 = sbr.rel (0) target = $region61
    $region60: #{tpu_custom_call.1} parent=1 // pred_region
      %121 = dma.done [#allocation12], 256
    $region61: #{tpu_custom_call.1} parent=1 // pred_fallthru
      _
    %v122 = vld [vmem:[#allocation3] sm:$0xff]
    %v123 = vld [vmem:[#allocation3 + $0x8] sm:$0xff]
    %v124 = vld [vmem:[#allocation3 + $0x10] sm:$0xff]
    %v125 = vld [vmem:[#allocation3 + $0x18] sm:$0xff]
    %v126 = vld [vmem:[#allocation3 + $0x20] sm:$0xff]
    %v127 = vld [vmem:[#allocation3 + $0x28] sm:$0xff]
    %v128 = vld [vmem:[#allocation3 + $0x30] sm:$0xff]
    %v129 = vld [vmem:[#allocation3 + $0x38] sm:$0xff]
    %v130 = vld [vmem:[#allocation3 + $0x40] sm:$0xff]
    %v131 = vld [vmem:[#allocation3 + $0x48] sm:$0xff]
    %v132 = vld [vmem:[#allocation3 + $0x50] sm:$0xff]
    %v133 = vld [vmem:[#allocation3 + $0x58] sm:$0xff]
    %v134 = vld [vmem:[#allocation3 + $0x60] sm:$0xff]
    %v135 = vld [vmem:[#allocation3 + $0x68] sm:$0xff]
    %v136 = vld [vmem:[#allocation3 + $0x70] sm:$0xff]
    %v137 = vld [vmem:[#allocation3 + $0x78] sm:$0xff]
    %v138 = vpack.c.bf16 %v122, %v122
    %v139 = vpack.c.bf16 %v123, %v123
    %v140 = vpack.c.bf16 %v124, %v124
    %v141 = vpack.c.bf16 %v125, %v125
    %v142 = vpack.c.bf16 %v126, %v126
    %v143 = vpack.c.bf16 %v127, %v127
    %v144 = vpack.c.bf16 %v128, %v128
    %v145 = vpack.c.bf16 %v129, %v129
    %v146 = vpack.c.bf16 %v130, %v130
    %v147 = vpack.c.bf16 %v131, %v131
    %v148 = vpack.c.bf16 %v132, %v132
    %v149 = vpack.c.bf16 %v133, %v133
    %v150 = vpack.c.bf16 %v134, %v134
    %v151 = vpack.c.bf16 %v135, %v135
    %v152 = vpack.c.bf16 %v136, %v136
    %v153 = vpack.c.bf16 %v137, %v137
    %v154 = vld [vmem:[#allocation8] sm:$0xf]
    %v155 = vld [vmem:[#allocation8 + $0x4] sm:$0xf]
    %v156 = vld [vmem:[#allocation8 + $0x8] sm:$0xf]
    %v157 = vld [vmem:[#allocation8 + $0xc] sm:$0xf]
    %v158 = vld [vmem:[#allocation8 + $0x10] sm:$0xf]
    %v159 = vld [vmem:[#allocation8 + $0x14] sm:$0xf]
    %v160 = vld [vmem:[#allocation8 + $0x18] sm:$0xf]
    %v161 = vld [vmem:[#allocation8 + $0x1c] sm:$0xf]
    %v162 = vld [vmem:[#allocation8 + $0x20] sm:$0xf]
    %v163 = vld [vmem:[#allocation8 + $0x24] sm:$0xf]
    %v164 = vld [vmem:[#allocation8 + $0x28] sm:$0xf]
    %v165 = vld [vmem:[#allocation8 + $0x2c] sm:$0xf]
    %v166 = vld [vmem:[#allocation8 + $0x30] sm:$0xf]
    %v167 = vld [vmem:[#allocation8 + $0x34] sm:$0xf]
    %v168 = vld [vmem:[#allocation8 + $0x38] sm:$0xf]
    %v169 = vld [vmem:[#allocation8 + $0x3c] sm:$0xf]
    %v170 = vld [vmem:[#allocation8 + $0x40] sm:$0xf]
    %v171 = vld [vmem:[#allocation8 + $0x44] sm:$0xf]
    %v172 = vld [vmem:[#allocation8 + $0x48] sm:$0xf]
    %v173 = vld [vmem:[#allocation8 + $0x4c] sm:$0xf]
    %v174 = vld [vmem:[#allocation8 + $0x50] sm:$0xf]
    %v175 = vld [vmem:[#allocation8 + $0x54] sm:$0xf]
    %v176 = vld [vmem:[#allocation8 + $0x58] sm:$0xf]
    %v177 = vld [vmem:[#allocation8 + $0x5c] sm:$0xf]
    %v178 = vld [vmem:[#allocation8 + $0x60] sm:$0xf]
    %v179 = vld [vmem:[#allocation8 + $0x64] sm:$0xf]
    %v180 = vld [vmem:[#allocation8 + $0x68] sm:$0xf]
    %v181 = vld [vmem:[#allocation8 + $0x6c] sm:$0xf]
    %v182 = vld [vmem:[#allocation8 + $0x70] sm:$0xf]
    %v183 = vld [vmem:[#allocation8 + $0x74] sm:$0xf]
    %v184 = vld [vmem:[#allocation8 + $0x78] sm:$0xf]
    %v185 = vld [vmem:[#allocation8 + $0x7c] sm:$0xf]
    %v186 = vld [vmem:[#allocation8 + $0x80] sm:$0xf]
    %v187 = vld [vmem:[#allocation8 + $0x84] sm:$0xf]
    %v188 = vld [vmem:[#allocation8 + $0x88] sm:$0xf]
    %v189 = vld [vmem:[#allocation8 + $0x8c] sm:$0xf]
    %v190 = vld [vmem:[#allocation8 + $0x90] sm:$0xf]
    %v191 = vld [vmem:[#allocation8 + $0x94] sm:$0xf]
    %v192 = vld [vmem:[#allocation8 + $0x98] sm:$0xf]
    %v193 = vld [vmem:[#allocation8 + $0x9c] sm:$0xf]
    %v194 = vld [vmem:[#allocation8 + $0xa0] sm:$0xf]
    %v195 = vld [vmem:[#allocation8 + $0xa4] sm:$0xf]
    %v196 = vld [vmem:[#allocation8 + $0xa8] sm:$0xf]
    %v197 = vld [vmem:[#allocation8 + $0xac] sm:$0xf]
    %v198 = vld [vmem:[#allocation8 + $0xb0] sm:$0xf]
    %v199 = vld [vmem:[#allocation8 + $0xb4] sm:$0xf]
    %v200 = vld [vmem:[#allocation8 + $0xb8] sm:$0xf]
    %v201 = vld [vmem:[#allocation8 + $0xbc] sm:$0xf]
    %v202 = vld [vmem:[#allocation8 + $0xc0] sm:$0xf]
    %v203 = vld [vmem:[#allocation8 + $0xc4] sm:$0xf]
    %v204 = vld [vmem:[#allocation8 + $0xc8] sm:$0xf]
    %v205 = vld [vmem:[#allocation8 + $0xcc] sm:$0xf]
    %v206 = vld [vmem:[#allocation8 + $0xd0] sm:$0xf]
    %v207 = vld [vmem:[#allocation8 + $0xd4] sm:$0xf]
    %v208 = vld [vmem:[#allocation8 + $0xd8] sm:$0xf]
    %v209 = vld [vmem:[#allocation8 + $0xdc] sm:$0xf]
    %v210 = vld [vmem:[#allocation8 + $0xe0] sm:$0xf]
    %v211 = vld [vmem:[#allocation8 + $0xe4] sm:$0xf]
    %v212 = vld [vmem:[#allocation8 + $0xe8] sm:$0xf]
    %v213 = vld [vmem:[#allocation8 + $0xec] sm:$0xf]
    %v214 = vld [vmem:[#allocation8 + $0xf0] sm:$0xf]
    %v215 = vld [vmem:[#allocation8 + $0xf4] sm:$0xf]
    %v216 = vld [vmem:[#allocation8 + $0xf8] sm:$0xf]
    %v217 = vld [vmem:[#allocation8 + $0xfc] sm:$0xf]
    %v218 = vld [vmem:[#allocation8 + $0x100] sm:$0xf]
    %v219 = vld [vmem:[#allocation8 + $0x104] sm:$0xf]
    %v220 = vld [vmem:[#allocation8 + $0x108] sm:$0xf]
    %v221 = vld [vmem:[#allocation8 + $0x10c] sm:$0xf]
    %v222 = vld [vmem:[#allocation8 + $0x110] sm:$0xf]
    %v223 = vld [vmem:[#allocation8 + $0x114] sm:$0xf]
    %v224 = vld [vmem:[#allocation8 + $0x118] sm:$0xf]
    %v225 = vld [vmem:[#allocation8 + $0x11c] sm:$0xf]
    %v226 = vld [vmem:[#allocation8 + $0x120] sm:$0xf]
    %v227 = vld [vmem:[#allocation8 + $0x124] sm:$0xf]
    %v228 = vld [vmem:[#allocation8 + $0x128] sm:$0xf]
    %v229 = vld [vmem:[#allocation8 + $0x12c] sm:$0xf]
    %v230 = vld [vmem:[#allocation8 + $0x130] sm:$0xf]
    %v231 = vld [vmem:[#allocation8 + $0x134] sm:$0xf]
    %v232 = vld [vmem:[#allocation8 + $0x138] sm:$0xf]
    %v233 = vld [vmem:[#allocation8 + $0x13c] sm:$0xf]
    %v234 = vld [vmem:[#allocation8 + $0x140] sm:$0xf]
    %v235 = vld [vmem:[#allocation8 + $0x144] sm:$0xf]
    %v236 = vld [vmem:[#allocation8 + $0x148] sm:$0xf]
    %v237 = vld [vmem:[#allocation8 + $0x14c] sm:$0xf]
    %v238 = vld [vmem:[#allocation8 + $0x150] sm:$0xf]
    %v239 = vld [vmem:[#allocation8 + $0x154] sm:$0xf]
    %v240 = vld [vmem:[#allocation8 + $0x158] sm:$0xf]
    %v241 = vld [vmem:[#allocation8 + $0x15c] sm:$0xf]
    %v242 = vld [vmem:[#allocation8 + $0x160] sm:$0xf]
    %v243 = vld [vmem:[#allocation8 + $0x164] sm:$0xf]
    %v244 = vld [vmem:[#allocation8 + $0x168] sm:$0xf]
    %v245 = vld [vmem:[#allocation8 + $0x16c] sm:$0xf]
    %v246 = vld [vmem:[#allocation8 + $0x170] sm:$0xf]
    %v247 = vld [vmem:[#allocation8 + $0x174] sm:$0xf]
    %v248 = vld [vmem:[#allocation8 + $0x178] sm:$0xf]
    %v249 = vld [vmem:[#allocation8 + $0x17c] sm:$0xf]
    %v250 = vld [vmem:[#allocation8 + $0x180] sm:$0xf]
    %v251 = vld [vmem:[#allocation8 + $0x184] sm:$0xf]
    %v252 = vld [vmem:[#allocation8 + $0x188] sm:$0xf]
    %v253 = vld [vmem:[#allocation8 + $0x18c] sm:$0xf]
    %v254 = vld [vmem:[#allocation8 + $0x190] sm:$0xf]
    %v255 = vld [vmem:[#allocation8 + $0x194] sm:$0xf]
    %v256 = vld [vmem:[#allocation8 + $0x198] sm:$0xf]
    %v257 = vld [vmem:[#allocation8 + $0x19c] sm:$0xf]
    %v258 = vld [vmem:[#allocation8 + $0x1a0] sm:$0xf]
    %v259 = vld [vmem:[#allocation8 + $0x1a4] sm:$0xf]
    %v260 = vld [vmem:[#allocation8 + $0x1a8] sm:$0xf]
    %v261 = vld [vmem:[#allocation8 + $0x1ac] sm:$0xf]
    %v262 = vld [vmem:[#allocation8 + $0x1b0] sm:$0xf]
    %v263 = vld [vmem:[#allocation8 + $0x1b4] sm:$0xf]
    %v264 = vld [vmem:[#allocation8 + $0x1b8] sm:$0xf]
    %v265 = vld [vmem:[#allocation8 + $0x1bc] sm:$0xf]
    %v266 = vld [vmem:[#allocation8 + $0x1c0] sm:$0xf]
    %v267 = vld [vmem:[#allocation8 + $0x1c4] sm:$0xf]
    %v268 = vld [vmem:[#allocation8 + $0x1c8] sm:$0xf]
    %v269 = vld [vmem:[#allocation8 + $0x1cc] sm:$0xf]
    %v270 = vld [vmem:[#allocation8 + $0x1d0] sm:$0xf]
    %v271 = vld [vmem:[#allocation8 + $0x1d4] sm:$0xf]
    %v272 = vld [vmem:[#allocation8 + $0x1d8] sm:$0xf]
    %v273 = vld [vmem:[#allocation8 + $0x1dc] sm:$0xf]
    %v274 = vld [vmem:[#allocation8 + $0x1e0] sm:$0xf]
    %v275 = vld [vmem:[#allocation8 + $0x1e4] sm:$0xf]
    %v276 = vld [vmem:[#allocation8 + $0x1e8] sm:$0xf]
    %v277 = vld [vmem:[#allocation8 + $0x1ec] sm:$0xf]
    %v278 = vld [vmem:[#allocation8 + $0x1f0] sm:$0xf]
    %v279 = vld [vmem:[#allocation8 + $0x1f4] sm:$0xf]
    %v280 = vld [vmem:[#allocation8 + $0x1f8] sm:$0xf]
    %v281 = vld [vmem:[#allocation8 + $0x1fc] sm:$0xf]
    %v282 = vld [vmem:[#allocation8 + $0x200] sm:$0xf]
    %v283 = vld [vmem:[#allocation8 + $0x204] sm:$0xf]
    %v284 = vld [vmem:[#allocation8 + $0x208] sm:$0xf]
    %v285 = vld [vmem:[#allocation8 + $0x20c] sm:$0xf]
    %v286 = vld [vmem:[#allocation8 + $0x210] sm:$0xf]
    %v287 = vld [vmem:[#allocation8 + $0x214] sm:$0xf]
    %v288 = vld [vmem:[#allocation8 + $0x218] sm:$0xf]
    %v289 = vld [vmem:[#allocation8 + $0x21c] sm:$0xf]
    %v290 = vld [vmem:[#allocation8 + $0x220] sm:$0xf]
    %v291 = vld [vmem:[#allocation8 + $0x224] sm:$0xf]
    %v292 = vld [vmem:[#allocation8 + $0x228] sm:$0xf]
    %v293 = vld [vmem:[#allocation8 + $0x22c] sm:$0xf]
    %v294 = vld [vmem:[#allocation8 + $0x230] sm:$0xf]
    %v295 = vld [vmem:[#allocation8 + $0x234] sm:$0xf]
    %v296 = vld [vmem:[#allocation8 + $0x238] sm:$0xf]
    %v297 = vld [vmem:[#allocation8 + $0x23c] sm:$0xf]
    %v298 = vld [vmem:[#allocation8 + $0x240] sm:$0xf]
    %v299 = vld [vmem:[#allocation8 + $0x244] sm:$0xf]
    %v300 = vld [vmem:[#allocation8 + $0x248] sm:$0xf]
    %v301 = vld [vmem:[#allocation8 + $0x24c] sm:$0xf]
    %v302 = vld [vmem:[#allocation8 + $0x250] sm:$0xf]
    %v303 = vld [vmem:[#allocation8 + $0x254] sm:$0xf]
    %v304 = vld [vmem:[#allocation8 + $0x258] sm:$0xf]
    %v305 = vld [vmem:[#allocation8 + $0x25c] sm:$0xf]
    %v306 = vld [vmem:[#allocation8 + $0x260] sm:$0xf]
    %v307 = vld [vmem:[#allocation8 + $0x264] sm:$0xf]
    %v308 = vld [vmem:[#allocation8 + $0x268] sm:$0xf]
    %v309 = vld [vmem:[#allocation8 + $0x26c] sm:$0xf]
    %v310 = vld [vmem:[#allocation8 + $0x270] sm:$0xf]
    %v311 = vld [vmem:[#allocation8 + $0x274] sm:$0xf]
    %v312 = vld [vmem:[#allocation8 + $0x278] sm:$0xf]
    %v313 = vld [vmem:[#allocation8 + $0x27c] sm:$0xf]
    %v314 = vld [vmem:[#allocation8 + $0x280] sm:$0xf]
    %v315 = vld [vmem:[#allocation8 + $0x284] sm:$0xf]
    %v316 = vld [vmem:[#allocation8 + $0x288] sm:$0xf]
    %v317 = vld [vmem:[#allocation8 + $0x28c] sm:$0xf]
    %v318 = vld [vmem:[#allocation8 + $0x290] sm:$0xf]
    %v319 = vld [vmem:[#allocation8 + $0x294] sm:$0xf]
    %v320 = vld [vmem:[#allocation8 + $0x298] sm:$0xf]
    %v321 = vld [vmem:[#allocation8 + $0x29c] sm:$0xf]
    %v322 = vld [vmem:[#allocation8 + $0x2a0] sm:$0xf]
    %v323 = vld [vmem:[#allocation8 + $0x2a4] sm:$0xf]
    %v324 = vld [vmem:[#allocation8 + $0x2a8] sm:$0xf]
    %v325 = vld [vmem:[#allocation8 + $0x2ac] sm:$0xf]
    %v326 = vld [vmem:[#allocation8 + $0x2b0] sm:$0xf]
    %v327 = vld [vmem:[#allocation8 + $0x2b4] sm:$0xf]
    %v328 = vld [vmem:[#allocation8 + $0x2b8] sm:$0xf]
    %v329 = vld [vmem:[#allocation8 + $0x2bc] sm:$0xf]
    %v330 = vld [vmem:[#allocation8 + $0x2c0] sm:$0xf]
    %v331 = vld [vmem:[#allocation8 + $0x2c4] sm:$0xf]
    %v332 = vld [vmem:[#allocation8 + $0x2c8] sm:$0xf]
    %v333 = vld [vmem:[#allocation8 + $0x2cc] sm:$0xf]
    %v334 = vld [vmem:[#allocation8 + $0x2d0] sm:$0xf]
    %v335 = vld [vmem:[#allocation8 + $0x2d4] sm:$0xf]
    %v336 = vld [vmem:[#allocation8 + $0x2d8] sm:$0xf]
    %v337 = vld [vmem:[#allocation8 + $0x2dc] sm:$0xf]
    %v338 = vld [vmem:[#allocation8 + $0x2e0] sm:$0xf]
    %v339 = vld [vmem:[#allocation8 + $0x2e4] sm:$0xf]
    %v340 = vld [vmem:[#allocation8 + $0x2e8] sm:$0xf]
    %v341 = vld [vmem:[#allocation8 + $0x2ec] sm:$0xf]
    %v342 = vld [vmem:[#allocation8 + $0x2f0] sm:$0xf]
    %v343 = vld [vmem:[#allocation8 + $0x2f4] sm:$0xf]
    %v344 = vld [vmem:[#allocation8 + $0x2f8] sm:$0xf]
    %v345 = vld [vmem:[#allocation8 + $0x2fc] sm:$0xf]
    %v346 = vld [vmem:[#allocation8 + $0x300] sm:$0xf]
    %v347 = vld [vmem:[#allocation8 + $0x304] sm:$0xf]
    %v348 = vld [vmem:[#allocation8 + $0x308] sm:$0xf]
    %v349 = vld [vmem:[#allocation8 + $0x30c] sm:$0xf]
    %v350 = vld [vmem:[#allocation8 + $0x310] sm:$0xf]
    %v351 = vld [vmem:[#allocation8 + $0x314] sm:$0xf]
    %v352 = vld [vmem:[#allocation8 + $0x318] sm:$0xf]
    %v353 = vld [vmem:[#allocation8 + $0x31c] sm:$0xf]
    %v354 = vld [vmem:[#allocation8 + $0x320] sm:$0xf]
    %v355 = vld [vmem:[#allocation8 + $0x324] sm:$0xf]
    %v356 = vld [vmem:[#allocation8 + $0x328] sm:$0xf]
    %v357 = vld [vmem:[#allocation8 + $0x32c] sm:$0xf]
    %v358 = vld [vmem:[#allocation8 + $0x330] sm:$0xf]
    %v359 = vld [vmem:[#allocation8 + $0x334] sm:$0xf]
    %v360 = vld [vmem:[#allocation8 + $0x338] sm:$0xf]
    %v361 = vld [vmem:[#allocation8 + $0x33c] sm:$0xf]
    %v362 = vld [vmem:[#allocation8 + $0x340] sm:$0xf]
    %v363 = vld [vmem:[#allocation8 + $0x344] sm:$0xf]
    %v364 = vld [vmem:[#allocation8 + $0x348] sm:$0xf]
    %v365 = vld [vmem:[#allocation8 + $0x34c] sm:$0xf]
    %v366 = vld [vmem:[#allocation8 + $0x350] sm:$0xf]
    %v367 = vld [vmem:[#allocation8 + $0x354] sm:$0xf]
    %v368 = vld [vmem:[#allocation8 + $0x358] sm:$0xf]
    %v369 = vld [vmem:[#allocation8 + $0x35c] sm:$0xf]
    %v370 = vld [vmem:[#allocation8 + $0x360] sm:$0xf]
    %v371 = vld [vmem:[#allocation8 + $0x364] sm:$0xf]
    %v372 = vld [vmem:[#allocation8 + $0x368] sm:$0xf]
    %v373 = vld [vmem:[#allocation8 + $0x36c] sm:$0xf]
    %v374 = vld [vmem:[#allocation8 + $0x370] sm:$0xf]
    %v375 = vld [vmem:[#allocation8 + $0x374] sm:$0xf]
    %v376 = vld [vmem:[#allocation8 + $0x378] sm:$0xf]
    %v377 = vld [vmem:[#allocation8 + $0x37c] sm:$0xf]
    %v378 = vld [vmem:[#allocation8 + $0x380] sm:$0xf]
    %v379 = vld [vmem:[#allocation8 + $0x384] sm:$0xf]
    %v380 = vld [vmem:[#allocation8 + $0x388] sm:$0xf]
    %v381 = vld [vmem:[#allocation8 + $0x38c] sm:$0xf]
    %v382 = vld [vmem:[#allocation8 + $0x390] sm:$0xf]
    %v383 = vld [vmem:[#allocation8 + $0x394] sm:$0xf]
    %v384 = vld [vmem:[#allocation8 + $0x398] sm:$0xf]
    %v385 = vld [vmem:[#allocation8 + $0x39c] sm:$0xf]
    %v386 = vld [vmem:[#allocation8 + $0x3a0] sm:$0xf]
    %v387 = vld [vmem:[#allocation8 + $0x3a4] sm:$0xf]
    %v388 = vld [vmem:[#allocation8 + $0x3a8] sm:$0xf]
    %v389 = vld [vmem:[#allocation8 + $0x3ac] sm:$0xf]
    %v390 = vld [vmem:[#allocation8 + $0x3b0] sm:$0xf]
    %v391 = vld [vmem:[#allocation8 + $0x3b4] sm:$0xf]
    %v392 = vld [vmem:[#allocation8 + $0x3b8] sm:$0xf]
    %v393 = vld [vmem:[#allocation8 + $0x3bc] sm:$0xf]
    %v394 = vld [vmem:[#allocation8 + $0x3c0] sm:$0xf]
    %v395 = vld [vmem:[#allocation8 + $0x3c4] sm:$0xf]
    %v396 = vld [vmem:[#allocation8 + $0x3c8] sm:$0xf]
    %v397 = vld [vmem:[#allocation8 + $0x3cc] sm:$0xf]
    %v398 = vld [vmem:[#allocation8 + $0x3d0] sm:$0xf]
    %v399 = vld [vmem:[#allocation8 + $0x3d4] sm:$0xf]
    %v400 = vld [vmem:[#allocation8 + $0x3d8] sm:$0xf]
    %v401 = vld [vmem:[#allocation8 + $0x3dc] sm:$0xf]
    %v402 = vld [vmem:[#allocation8 + $0x3e0] sm:$0xf]
    %v403 = vld [vmem:[#allocation8 + $0x3e4] sm:$0xf]
    %v404 = vld [vmem:[#allocation8 + $0x3e8] sm:$0xf]
    %v405 = vld [vmem:[#allocation8 + $0x3ec] sm:$0xf]
    %v406 = vld [vmem:[#allocation8 + $0x3f0] sm:$0xf]
    %v407 = vld [vmem:[#allocation8 + $0x3f4] sm:$0xf]
    %v408 = vld [vmem:[#allocation8 + $0x3f8] sm:$0xf]
    %v409 = vld [vmem:[#allocation8 + $0x3fc] sm:$0xf]
    %v410 = vld [vmem:[#allocation5] sm:$0xff]
    %v411 = vld [vmem:[#allocation5 + $0x8] sm:$0xff]
    %v412 = vld [vmem:[#allocation5 + $0x10] sm:$0xff]
    %v413 = vld [vmem:[#allocation5 + $0x18] sm:$0xff]
    %v414 = vld [vmem:[#allocation5 + $0x20] sm:$0xff]
    %v415 = vld [vmem:[#allocation5 + $0x28] sm:$0xff]
    %v416 = vpack.c.bf16 %v410, %v410
    %v417 = vpack.c.bf16 %v411, %v411
    %v418 = vpack.c.bf16 %v412, %v412
    %v419 = vpack.c.bf16 %v413, %v413
    %v420 = vpack.c.bf16 %v414, %v414
    %v421 = vpack.c.bf16 %v415, %v415
    %v422 = vld [vmem:[#allocation10] sm:$0xf]
    %v423 = vld [vmem:[#allocation10 + $0x4] sm:$0xf]
    %v424 = vld [vmem:[#allocation10 + $0x8] sm:$0xf]
    %v425 = vld [vmem:[#allocation10 + $0xc] sm:$0xf]
    %v426 = vld [vmem:[#allocation10 + $0x10] sm:$0xf]
    %v427 = vld [vmem:[#allocation10 + $0x14] sm:$0xf]
    %v428 = vld [vmem:[#allocation10 + $0x18] sm:$0xf]
    %v429 = vld [vmem:[#allocation10 + $0x1c] sm:$0xf]
    %v430 = vld [vmem:[#allocation10 + $0x20] sm:$0xf]
    %v431 = vld [vmem:[#allocation10 + $0x24] sm:$0xf]
    %v432 = vld [vmem:[#allocation10 + $0x28] sm:$0xf]
    %v433 = vld [vmem:[#allocation10 + $0x2c] sm:$0xf]
    %v434 = vld [vmem:[#allocation10 + $0x30] sm:$0xf]
    %v435 = vld [vmem:[#allocation10 + $0x34] sm:$0xf]
    %v436 = vld [vmem:[#allocation10 + $0x38] sm:$0xf]
    %v437 = vld [vmem:[#allocation10 + $0x3c] sm:$0xf]
    %v438 = vld [vmem:[#allocation10 + $0x40] sm:$0xf]
    %v439 = vld [vmem:[#allocation10 + $0x44] sm:$0xf]
    %v440 = vld [vmem:[#allocation10 + $0x48] sm:$0xf]
    %v441 = vld [vmem:[#allocation10 + $0x4c] sm:$0xf]
    %v442 = vld [vmem:[#allocation10 + $0x50] sm:$0xf]
    %v443 = vld [vmem:[#allocation10 + $0x54] sm:$0xf]
    %v444 = vld [vmem:[#allocation10 + $0x58] sm:$0xf]
    %v445 = vld [vmem:[#allocation10 + $0x5c] sm:$0xf]
    %v446 = vld [vmem:[#allocation10 + $0x60] sm:$0xf]
    %v447 = vld [vmem:[#allocation10 + $0x64] sm:$0xf]
    %v448 = vld [vmem:[#allocation10 + $0x68] sm:$0xf]
    %v449 = vld [vmem:[#allocation10 + $0x6c] sm:$0xf]
    %v450 = vld [vmem:[#allocation10 + $0x70] sm:$0xf]
    %v451 = vld [vmem:[#allocation10 + $0x74] sm:$0xf]
    %v452 = vld [vmem:[#allocation10 + $0x78] sm:$0xf]
    %v453 = vld [vmem:[#allocation10 + $0x7c] sm:$0xf]
    %v454 = vld [vmem:[#allocation10 + $0x80] sm:$0xf]
    %v455 = vld [vmem:[#allocation10 + $0x84] sm:$0xf]
    %v456 = vld [vmem:[#allocation10 + $0x88] sm:$0xf]
    %v457 = vld [vmem:[#allocation10 + $0x8c] sm:$0xf]
    %v458 = vld [vmem:[#allocation10 + $0x90] sm:$0xf]
    %v459 = vld [vmem:[#allocation10 + $0x94] sm:$0xf]
    %v460 = vld [vmem:[#allocation10 + $0x98] sm:$0xf]
    %v461 = vld [vmem:[#allocation10 + $0x9c] sm:$0xf]
    %v462 = vld [vmem:[#allocation10 + $0xa0] sm:$0xf]
    %v463 = vld [vmem:[#allocation10 + $0xa4] sm:$0xf]
    %v464 = vld [vmem:[#allocation10 + $0xa8] sm:$0xf]
    %v465 = vld [vmem:[#allocation10 + $0xac] sm:$0xf]
    %v466 = vld [vmem:[#allocation10 + $0xb0] sm:$0xf]
    %v467 = vld [vmem:[#allocation10 + $0xb4] sm:$0xf]
    %v468 = vld [vmem:[#allocation10 + $0xb8] sm:$0xf]
    %v469 = vld [vmem:[#allocation10 + $0xbc] sm:$0xf]
    %v470 = vld [vmem:[#allocation10 + $0xc0] sm:$0xf]
    %v471 = vld [vmem:[#allocation10 + $0xc4] sm:$0xf]
    %v472 = vld [vmem:[#allocation10 + $0xc8] sm:$0xf]
    %v473 = vld [vmem:[#allocation10 + $0xcc] sm:$0xf]
    %v474 = vld [vmem:[#allocation10 + $0xd0] sm:$0xf]
    %v475 = vld [vmem:[#allocation10 + $0xd4] sm:$0xf]
    %v476 = vld [vmem:[#allocation10 + $0xd8] sm:$0xf]
    %v477 = vld [vmem:[#allocation10 + $0xdc] sm:$0xf]
    %v478 = vld [vmem:[#allocation10 + $0xe0] sm:$0xf]
    %v479 = vld [vmem:[#allocation10 + $0xe4] sm:$0xf]
    %v480 = vld [vmem:[#allocation10 + $0xe8] sm:$0xf]
    %v481 = vld [vmem:[#allocation10 + $0xec] sm:$0xf]
    %v482 = vld [vmem:[#allocation10 + $0xf0] sm:$0xf]
    %v483 = vld [vmem:[#allocation10 + $0xf4] sm:$0xf]
    %v484 = vld [vmem:[#allocation10 + $0xf8] sm:$0xf]
    %v485 = vld [vmem:[#allocation10 + $0xfc] sm:$0xf]
    %v486 = vld [vmem:[#allocation10 + $0x100] sm:$0xf]
    %v487 = vld [vmem:[#allocation10 + $0x104] sm:$0xf]
    %v488 = vld [vmem:[#allocation10 + $0x108] sm:$0xf]
    %v489 = vld [vmem:[#allocation10 + $0x10c] sm:$0xf]
    %v490 = vld [vmem:[#allocation10 + $0x110] sm:$0xf]
    %v491 = vld [vmem:[#allocation10 + $0x114] sm:$0xf]
    %v492 = vld [vmem:[#allocation10 + $0x118] sm:$0xf]
    %v493 = vld [vmem:[#allocation10 + $0x11c] sm:$0xf]
    %v494 = vld [vmem:[#allocation10 + $0x120] sm:$0xf]
    %v495 = vld [vmem:[#allocation10 + $0x124] sm:$0xf]
    %v496 = vld [vmem:[#allocation10 + $0x128] sm:$0xf]
    %v497 = vld [vmem:[#allocation10 + $0x12c] sm:$0xf]
    %v498 = vld [vmem:[#allocation10 + $0x130] sm:$0xf]
    %v499 = vld [vmem:[#allocation10 + $0x134] sm:$0xf]
    %v500 = vld [vmem:[#allocation10 + $0x138] sm:$0xf]
    %v501 = vld [vmem:[#allocation10 + $0x13c] sm:$0xf]
    %v502 = vld [vmem:[#allocation10 + $0x140] sm:$0xf]
    %v503 = vld [vmem:[#allocation10 + $0x144] sm:$0xf]
    %v504 = vld [vmem:[#allocation10 + $0x148] sm:$0xf]
    %v505 = vld [vmem:[#allocation10 + $0x14c] sm:$0xf]
    %v506 = vld [vmem:[#allocation10 + $0x150] sm:$0xf]
    %v507 = vld [vmem:[#allocation10 + $0x154] sm:$0xf]
    %v508 = vld [vmem:[#allocation10 + $0x158] sm:$0xf]
    %v509 = vld [vmem:[#allocation10 + $0x15c] sm:$0xf]
    %v510 = vld [vmem:[#allocation10 + $0x160] sm:$0xf]
    %v511 = vld [vmem:[#allocation10 + $0x164] sm:$0xf]
    %v512 = vld [vmem:[#allocation10 + $0x168] sm:$0xf]
    %v513 = vld [vmem:[#allocation10 + $0x16c] sm:$0xf]
    %v514 = vld [vmem:[#allocation10 + $0x170] sm:$0xf]
    %v515 = vld [vmem:[#allocation10 + $0x174] sm:$0xf]
    %v516 = vld [vmem:[#allocation10 + $0x178] sm:$0xf]
    %v517 = vld [vmem:[#allocation10 + $0x17c] sm:$0xf]
    %v614 = vunpack.c.l.b16 %v422
    %v615 = vunpack.c.l.b16 %v423
    %v616 = vunpack.c.l.b16 %v424
    %v617 = vunpack.c.l.b16 %v425
    %v618 = vunpack.c.l.b16 %v426
    %v619 = vunpack.c.l.b16 %v427
    %v620 = vunpack.c.l.b16 %v428
    %v621 = vunpack.c.l.b16 %v429
    %v622 = vunpack.c.l.b16 %v430
    %v623 = vunpack.c.l.b16 %v431
    %v624 = vunpack.c.l.b16 %v432
    %v625 = vunpack.c.l.b16 %v433
    %v626 = vunpack.c.l.b16 %v434
    %v627 = vunpack.c.l.b16 %v435
    %v628 = vunpack.c.l.b16 %v436
    %v629 = vunpack.c.l.b16 %v437
    %v630 = vunpack.c.l.b16 %v438
    %v631 = vunpack.c.l.b16 %v439
    %v632 = vunpack.c.l.b16 %v440
    %v633 = vunpack.c.l.b16 %v441
    %v634 = vunpack.c.l.b16 %v442
    %v635 = vunpack.c.l.b16 %v443
    %v636 = vunpack.c.l.b16 %v444
    %v637 = vunpack.c.l.b16 %v445
    %v638 = vunpack.c.l.b16 %v446
    %v639 = vunpack.c.l.b16 %v447
    %v640 = vunpack.c.l.b16 %v448
    %v641 = vunpack.c.l.b16 %v449
    %v642 = vunpack.c.l.b16 %v450
    %v643 = vunpack.c.l.b16 %v451
    %v644 = vunpack.c.l.b16 %v452
    %v645 = vunpack.c.l.b16 %v453
    %v646 = vunpack.c.l.b16 %v454
    %v647 = vunpack.c.l.b16 %v455
    %v648 = vunpack.c.l.b16 %v456
    %v649 = vunpack.c.l.b16 %v457
    %v650 = vunpack.c.l.b16 %v458
    %v651 = vunpack.c.l.b16 %v459
    %v652 = vunpack.c.l.b16 %v460
    %v653 = vunpack.c.l.b16 %v461
    %v654 = vunpack.c.l.b16 %v462
    %v655 = vunpack.c.l.b16 %v463
    %v656 = vunpack.c.l.b16 %v464
    %v657 = vunpack.c.l.b16 %v465
    %v658 = vunpack.c.l.b16 %v466
    %v659 = vunpack.c.l.b16 %v467
    %v660 = vunpack.c.l.b16 %v468
    %v661 = vunpack.c.l.b16 %v469
    %v662 = vunpack.c.l.b16 %v470
    %v663 = vunpack.c.l.b16 %v471
    %v664 = vunpack.c.l.b16 %v472
    %v665 = vunpack.c.l.b16 %v473
    %v666 = vunpack.c.l.b16 %v474
    %v667 = vunpack.c.l.b16 %v475
    %v668 = vunpack.c.l.b16 %v476
    %v669 = vunpack.c.l.b16 %v477
    %v670 = vunpack.c.l.b16 %v478
    %v671 = vunpack.c.l.b16 %v479
    %v672 = vunpack.c.l.b16 %v480
    %v673 = vunpack.c.l.b16 %v481
    %v674 = vunpack.c.l.b16 %v482
    %v675 = vunpack.c.l.b16 %v483
    %v676 = vunpack.c.l.b16 %v484
    %v677 = vunpack.c.l.b16 %v485
    %v678 = vunpack.c.l.b16 %v486
    %v679 = vunpack.c.l.b16 %v487
    %v680 = vunpack.c.l.b16 %v488
    %v681 = vunpack.c.l.b16 %v489
    %v682 = vunpack.c.l.b16 %v490
    %v683 = vunpack.c.l.b16 %v491
    %v684 = vunpack.c.l.b16 %v492
    %v685 = vunpack.c.l.b16 %v493
    %v686 = vunpack.c.l.b16 %v494
    %v687 = vunpack.c.l.b16 %v495
    %v688 = vunpack.c.l.b16 %v496
    %v689 = vunpack.c.l.b16 %v497
    %v690 = vunpack.c.l.b16 %v498
    %v691 = vunpack.c.l.b16 %v499
    %v692 = vunpack.c.l.b16 %v500
    %v693 = vunpack.c.l.b16 %v501
    %v694 = vunpack.c.l.b16 %v502
    %v695 = vunpack.c.l.b16 %v503
    %v696 = vunpack.c.l.b16 %v504
    %v697 = vunpack.c.l.b16 %v505
    %v698 = vunpack.c.l.b16 %v506
    %v699 = vunpack.c.l.b16 %v507
    %v700 = vunpack.c.l.b16 %v508
    %v701 = vunpack.c.l.b16 %v509
    %v702 = vunpack.c.l.b16 %v510
    %v703 = vunpack.c.l.b16 %v511
    %v704 = vunpack.c.l.b16 %v512
    %v705 = vunpack.c.l.b16 %v513
    %v706 = vunpack.c.l.b16 %v514
    %v707 = vunpack.c.l.b16 %v515
    %v708 = vunpack.c.l.b16 %v516
    %v709 = vunpack.c.l.b16 %v517
    %v710 = vpack.c.b16 %v615, %v614
    %v711 = vpack.c.b16 %v617, %v616
    %v712 = vpack.c.b16 %v619, %v618
    %v713 = vpack.c.b16 %v621, %v620
    %v714 = vpack.c.b16 %v623, %v622
    %v715 = vpack.c.b16 %v625, %v624
    %v716 = vpack.c.b16 %v627, %v626
    %v717 = vpack.c.b16 %v629, %v628
    %v718 = vpack.c.b16 %v631, %v630
    %v719 = vpack.c.b16 %v633, %v632
    %v720 = vpack.c.b16 %v635, %v634
    %v721 = vpack.c.b16 %v637, %v636
    %v722 = vpack.c.b16 %v639, %v638
    %v723 = vpack.c.b16 %v641, %v640
    %v724 = vpack.c.b16 %v643, %v642
    %v725 = vpack.c.b16 %v645, %v644
    %v726 = vpack.c.b16 %v647, %v646
    %v727 = vpack.c.b16 %v649, %v648
    %v728 = vpack.c.b16 %v651, %v650
    %v729 = vpack.c.b16 %v653, %v652
    %v730 = vpack.c.b16 %v655, %v654
    %v731 = vpack.c.b16 %v657, %v656
    %v732 = vpack.c.b16 %v659, %v658
    %v733 = vpack.c.b16 %v661, %v660
    %v734 = vpack.c.b16 %v663, %v662
    %v735 = vpack.c.b16 %v665, %v664
    %v736 = vpack.c.b16 %v667, %v666
    %v737 = vpack.c.b16 %v669, %v668
    %v738 = vpack.c.b16 %v671, %v670
    %v739 = vpack.c.b16 %v673, %v672
    %v740 = vpack.c.b16 %v675, %v674
    %v741 = vpack.c.b16 %v677, %v676
    %v742 = vpack.c.b16 %v679, %v678
    %v743 = vpack.c.b16 %v681, %v680
    %v744 = vpack.c.b16 %v683, %v682
    %v745 = vpack.c.b16 %v685, %v684
    %v746 = vpack.c.b16 %v687, %v686
    %v747 = vpack.c.b16 %v689, %v688
    %v748 = vpack.c.b16 %v691, %v690
    %v749 = vpack.c.b16 %v693, %v692
    %v750 = vpack.c.b16 %v695, %v694
    %v751 = vpack.c.b16 %v697, %v696
    %v752 = vpack.c.b16 %v699, %v698
    %v753 = vpack.c.b16 %v701, %v700
    %v754 = vpack.c.b16 %v703, %v702
    %v755 = vpack.c.b16 %v705, %v704
    %v756 = vpack.c.b16 %v707, %v706
    %v757 = vpack.c.b16 %v709, %v708
    %806 = vmatpush.bf16.msra.mxu0 %v717
    %807 = vmatpush.bf16.msra.mxu0 %v716
    %808 = vmatpush.bf16.msra.mxu0 %v715
    %809 = vmatpush.bf16.msra.mxu0 %v714
    %810 = vmatpush.bf16.msra.mxu0 %v713
    %811 = vmatpush.bf16.msra.mxu0 %v712
    %812 = vmatpush.bf16.msra.mxu0 %v711
    %813 = vmatpush.bf16.msra.mxu0 %v710
    %814 = vmatmul.bf16.gmra.mxu0 %v416
    %v815 = vpop.f32.mrf.mxu0
    %v816 = vadd.f32 0.0, %v815
    %v817 = vpop.f32.mrf.mxu0
    %818 = vdwg.mxu0
    %819 = vmatpush.bf16.msra.mxu0 %v725
    %820 = vmatpush.bf16.msra.mxu0 %v724
    %821 = vmatpush.bf16.msra.mxu0 %v723
    %822 = vmatpush.bf16.msra.mxu0 %v722
    %823 = vmatpush.bf16.msra.mxu0 %v721
    %824 = vmatpush.bf16.msra.mxu0 %v720
    %825 = vmatpush.bf16.msra.mxu0 %v719
    %826 = vmatpush.bf16.msra.mxu0 %v718
    %827 = vmatmul.bf16.gmra.mxu0 %v417
    %v828 = vpop.f32.mrf.mxu0
    %v829 = vadd.f32 %v816, %v828
    %v830 = vpop.f32.mrf.mxu0
    %831 = vdwg.mxu0
    %832 = vmatpush.bf16.msra.mxu0 %v733
    %833 = vmatpush.bf16.msra.mxu0 %v732
    %834 = vmatpush.bf16.msra.mxu0 %v731
    %835 = vmatpush.bf16.msra.mxu0 %v730
    %836 = vmatpush.bf16.msra.mxu0 %v729
    %837 = vmatpush.bf16.msra.mxu0 %v728
    %838 = vmatpush.bf16.msra.mxu0 %v727
    %839 = vmatpush.bf16.msra.mxu0 %v726
    %840 = vmatmul.bf16.gmra.mxu0 %v418
    %v841 = vpop.f32.mrf.mxu0
    %v842 = vadd.f32 %v829, %v841
    %v843 = vpop.f32.mrf.mxu0
    %844 = vdwg.mxu0
    %845 = vmatpush.bf16.msra.mxu0 %v741
    %846 = vmatpush.bf16.msra.mxu0 %v740
    %847 = vmatpush.bf16.msra.mxu0 %v739
    %848 = vmatpush.bf16.msra.mxu0 %v738
    %849 = vmatpush.bf16.msra.mxu0 %v737
    %850 = vmatpush.bf16.msra.mxu0 %v736
    %851 = vmatpush.bf16.msra.mxu0 %v735
    %852 = vmatpush.bf16.msra.mxu0 %v734
    %853 = vmatmul.bf16.gmra.mxu0 %v419
    %v854 = vpop.f32.mrf.mxu0
    %v855 = vadd.f32 %v842, %v854
    %v856 = vpop.f32.mrf.mxu0
    %857 = vdwg.mxu0
    %858 = vmatpush.bf16.msra.mxu0 %v749
    %859 = vmatpush.bf16.msra.mxu0 %v748
    %860 = vmatpush.bf16.msra.mxu0 %v747
    %861 = vmatpush.bf16.msra.mxu0 %v746
    %862 = vmatpush.bf16.msra.mxu0 %v745
    %863 = vmatpush.bf16.msra.mxu0 %v744
    %864 = vmatpush.bf16.msra.mxu0 %v743
    %865 = vmatpush.bf16.msra.mxu0 %v742
    %866 = vmatmul.bf16.gmra.mxu0 %v420
    %v867 = vpop.f32.mrf.mxu0
    %v868 = vadd.f32 %v855, %v867
    %v869 = vpop.f32.mrf.mxu0
    %870 = vdwg.mxu0
    %871 = vmatpush.bf16.msra.mxu0 %v757
    %872 = vmatpush.bf16.msra.mxu0 %v756
    %873 = vmatpush.bf16.msra.mxu0 %v755
    %874 = vmatpush.bf16.msra.mxu0 %v754
    %875 = vmatpush.bf16.msra.mxu0 %v753
    %876 = vmatpush.bf16.msra.mxu0 %v752
    %877 = vmatpush.bf16.msra.mxu0 %v751
    %878 = vmatpush.bf16.msra.mxu0 %v750
    %879 = vmatmul.bf16.gmra.mxu0 %v421
    %v880 = vpop.f32.mrf.mxu0
    %v881 = vadd.f32 %v868, %v880
    %v882 = vpop.f32.mrf.mxu0
    %883 = vdwg.mxu0
    %v1140 = vunpack.c.l.b16 %v154
    %v1141 = vunpack.c.l.b16 %v155
    %v1142 = vunpack.c.l.b16 %v156
    %v1143 = vunpack.c.l.b16 %v157
    %v1144 = vunpack.c.l.b16 %v158
    %v1145 = vunpack.c.l.b16 %v159
    %v1146 = vunpack.c.l.b16 %v160
    %v1147 = vunpack.c.l.b16 %v161
    %v1148 = vunpack.c.l.b16 %v162
    %v1149 = vunpack.c.l.b16 %v163
    %v1150 = vunpack.c.l.b16 %v164
    %v1151 = vunpack.c.l.b16 %v165
    %v1152 = vunpack.c.l.b16 %v166
    %v1153 = vunpack.c.l.b16 %v167
    %v1154 = vunpack.c.l.b16 %v168
    %v1155 = vunpack.c.l.b16 %v169
    %v1156 = vunpack.c.l.b16 %v170
    %v1157 = vunpack.c.l.b16 %v171
    %v1158 = vunpack.c.l.b16 %v172
    %v1159 = vunpack.c.l.b16 %v173
    %v1160 = vunpack.c.l.b16 %v174
    %v1161 = vunpack.c.l.b16 %v175
    %v1162 = vunpack.c.l.b16 %v176
    %v1163 = vunpack.c.l.b16 %v177
    %v1164 = vunpack.c.l.b16 %v178
    %v1165 = vunpack.c.l.b16 %v179
    %v1166 = vunpack.c.l.b16 %v180
    %v1167 = vunpack.c.l.b16 %v181
    %v1168 = vunpack.c.l.b16 %v182
    %v1169 = vunpack.c.l.b16 %v183
    %v1170 = vunpack.c.l.b16 %v184
    %v1171 = vunpack.c.l.b16 %v185
    %v1172 = vunpack.c.l.b16 %v186
    %v1173 = vunpack.c.l.b16 %v187
    %v1174 = vunpack.c.l.b16 %v188
    %v1175 = vunpack.c.l.b16 %v189
    %v1176 = vunpack.c.l.b16 %v190
    %v1177 = vunpack.c.l.b16 %v191
    %v1178 = vunpack.c.l.b16 %v192
    %v1179 = vunpack.c.l.b16 %v193
    %v1180 = vunpack.c.l.b16 %v194
    %v1181 = vunpack.c.l.b16 %v195
    %v1182 = vunpack.c.l.b16 %v196
    %v1183 = vunpack.c.l.b16 %v197
    %v1184 = vunpack.c.l.b16 %v198
    %v1185 = vunpack.c.l.b16 %v199
    %v1186 = vunpack.c.l.b16 %v200
    %v1187 = vunpack.c.l.b16 %v201
    %v1188 = vunpack.c.l.b16 %v202
    %v1189 = vunpack.c.l.b16 %v203
    %v1190 = vunpack.c.l.b16 %v204
    %v1191 = vunpack.c.l.b16 %v205
    %v1192 = vunpack.c.l.b16 %v206
    %v1193 = vunpack.c.l.b16 %v207
    %v1194 = vunpack.c.l.b16 %v208
    %v1195 = vunpack.c.l.b16 %v209
    %v1196 = vunpack.c.l.b16 %v210
    %v1197 = vunpack.c.l.b16 %v211
    %v1198 = vunpack.c.l.b16 %v212
    %v1199 = vunpack.c.l.b16 %v213
    %v1200 = vunpack.c.l.b16 %v214
    %v1201 = vunpack.c.l.b16 %v215
    %v1202 = vunpack.c.l.b16 %v216
    %v1203 = vunpack.c.l.b16 %v217
    %v1204 = vunpack.c.l.b16 %v218
    %v1205 = vunpack.c.l.b16 %v219
    %v1206 = vunpack.c.l.b16 %v220
    %v1207 = vunpack.c.l.b16 %v221
    %v1208 = vunpack.c.l.b16 %v222
    %v1209 = vunpack.c.l.b16 %v223
    %v1210 = vunpack.c.l.b16 %v224
    %v1211 = vunpack.c.l.b16 %v225
    %v1212 = vunpack.c.l.b16 %v226
    %v1213 = vunpack.c.l.b16 %v227
    %v1214 = vunpack.c.l.b16 %v228
    %v1215 = vunpack.c.l.b16 %v229
    %v1216 = vunpack.c.l.b16 %v230
    %v1217 = vunpack.c.l.b16 %v231
    %v1218 = vunpack.c.l.b16 %v232
    %v1219 = vunpack.c.l.b16 %v233
    %v1220 = vunpack.c.l.b16 %v234
    %v1221 = vunpack.c.l.b16 %v235
    %v1222 = vunpack.c.l.b16 %v236
    %v1223 = vunpack.c.l.b16 %v237
    %v1224 = vunpack.c.l.b16 %v238
    %v1225 = vunpack.c.l.b16 %v239
    %v1226 = vunpack.c.l.b16 %v240
    %v1227 = vunpack.c.l.b16 %v241
    %v1228 = vunpack.c.l.b16 %v242
    %v1229 = vunpack.c.l.b16 %v243
    %v1230 = vunpack.c.l.b16 %v244
    %v1231 = vunpack.c.l.b16 %v245
    %v1232 = vunpack.c.l.b16 %v246
    %v1233 = vunpack.c.l.b16 %v247
    %v1234 = vunpack.c.l.b16 %v248
    %v1235 = vunpack.c.l.b16 %v249
    %v1236 = vunpack.c.l.b16 %v250
    %v1237 = vunpack.c.l.b16 %v251
    %v1238 = vunpack.c.l.b16 %v252
    %v1239 = vunpack.c.l.b16 %v253
    %v1240 = vunpack.c.l.b16 %v254
    %v1241 = vunpack.c.l.b16 %v255
    %v1242 = vunpack.c.l.b16 %v256
    %v1243 = vunpack.c.l.b16 %v257
    %v1244 = vunpack.c.l.b16 %v258
    %v1245 = vunpack.c.l.b16 %v259
    %v1246 = vunpack.c.l.b16 %v260
    %v1247 = vunpack.c.l.b16 %v261
    %v1248 = vunpack.c.l.b16 %v262
    %v1249 = vunpack.c.l.b16 %v263
    %v1250 = vunpack.c.l.b16 %v264
    %v1251 = vunpack.c.l.b16 %v265
    %v1252 = vunpack.c.l.b16 %v266
    %v1253 = vunpack.c.l.b16 %v267
    %v1254 = vunpack.c.l.b16 %v268
    %v1255 = vunpack.c.l.b16 %v269
    %v1256 = vunpack.c.l.b16 %v270
    %v1257 = vunpack.c.l.b16 %v271
    %v1258 = vunpack.c.l.b16 %v272
    %v1259 = vunpack.c.l.b16 %v273
    %v1260 = vunpack.c.l.b16 %v274
    %v1261 = vunpack.c.l.b16 %v275
    %v1262 = vunpack.c.l.b16 %v276
    %v1263 = vunpack.c.l.b16 %v277
    %v1264 = vunpack.c.l.b16 %v278
    %v1265 = vunpack.c.l.b16 %v279
    %v1266 = vunpack.c.l.b16 %v280
    %v1267 = vunpack.c.l.b16 %v281
    %v1268 = vunpack.c.l.b16 %v282
    %v1269 = vunpack.c.l.b16 %v283
    %v1270 = vunpack.c.l.b16 %v284
    %v1271 = vunpack.c.l.b16 %v285
    %v1272 = vunpack.c.l.b16 %v286
    %v1273 = vunpack.c.l.b16 %v287
    %v1274 = vunpack.c.l.b16 %v288
    %v1275 = vunpack.c.l.b16 %v289
    %v1276 = vunpack.c.l.b16 %v290
    %v1277 = vunpack.c.l.b16 %v291
    %v1278 = vunpack.c.l.b16 %v292
    %v1279 = vunpack.c.l.b16 %v293
    %v1280 = vunpack.c.l.b16 %v294
    %v1281 = vunpack.c.l.b16 %v295
    %v1282 = vunpack.c.l.b16 %v296
    %v1283 = vunpack.c.l.b16 %v297
    %v1284 = vunpack.c.l.b16 %v298
    %v1285 = vunpack.c.l.b16 %v299
    %v1286 = vunpack.c.l.b16 %v300
    %v1287 = vunpack.c.l.b16 %v301
    %v1288 = vunpack.c.l.b16 %v302
    %v1289 = vunpack.c.l.b16 %v303
    %v1290 = vunpack.c.l.b16 %v304
    %v1291 = vunpack.c.l.b16 %v305
    %v1292 = vunpack.c.l.b16 %v306
    %v1293 = vunpack.c.l.b16 %v307
    %v1294 = vunpack.c.l.b16 %v308
    %v1295 = vunpack.c.l.b16 %v309
    %v1296 = vunpack.c.l.b16 %v310
    %v1297 = vunpack.c.l.b16 %v311
    %v1298 = vunpack.c.l.b16 %v312
    %v1299 = vunpack.c.l.b16 %v313
    %v1300 = vunpack.c.l.b16 %v314
    %v1301 = vunpack.c.l.b16 %v315
    %v1302 = vunpack.c.l.b16 %v316
    %v1303 = vunpack.c.l.b16 %v317
    %v1304 = vunpack.c.l.b16 %v318
    %v1305 = vunpack.c.l.b16 %v319
    %v1306 = vunpack.c.l.b16 %v320
    %v1307 = vunpack.c.l.b16 %v321
    %v1308 = vunpack.c.l.b16 %v322
    %v1309 = vunpack.c.l.b16 %v323
    %v1310 = vunpack.c.l.b16 %v324
    %v1311 = vunpack.c.l.b16 %v325
    %v1312 = vunpack.c.l.b16 %v326
    %v1313 = vunpack.c.l.b16 %v327
    %v1314 = vunpack.c.l.b16 %v328
    %v1315 = vunpack.c.l.b16 %v329
    %v1316 = vunpack.c.l.b16 %v330
    %v1317 = vunpack.c.l.b16 %v331
    %v1318 = vunpack.c.l.b16 %v332
    %v1319 = vunpack.c.l.b16 %v333
    %v1320 = vunpack.c.l.b16 %v334
    %v1321 = vunpack.c.l.b16 %v335
    %v1322 = vunpack.c.l.b16 %v336
    %v1323 = vunpack.c.l.b16 %v337
    %v1324 = vunpack.c.l.b16 %v338
    %v1325 = vunpack.c.l.b16 %v339
    %v1326 = vunpack.c.l.b16 %v340
    %v1327 = vunpack.c.l.b16 %v341
    %v1328 = vunpack.c.l.b16 %v342
    %v1329 = vunpack.c.l.b16 %v343
    %v1330 = vunpack.c.l.b16 %v344
    %v1331 = vunpack.c.l.b16 %v345
    %v1332 = vunpack.c.l.b16 %v346
    %v1333 = vunpack.c.l.b16 %v347
    %v1334 = vunpack.c.l.b16 %v348
    %v1335 = vunpack.c.l.b16 %v349
    %v1336 = vunpack.c.l.b16 %v350
    %v1337 = vunpack.c.l.b16 %v351
    %v1338 = vunpack.c.l.b16 %v352
    %v1339 = vunpack.c.l.b16 %v353
    %v1340 = vunpack.c.l.b16 %v354
    %v1341 = vunpack.c.l.b16 %v355
    %v1342 = vunpack.c.l.b16 %v356
    %v1343 = vunpack.c.l.b16 %v357
    %v1344 = vunpack.c.l.b16 %v358
    %v1345 = vunpack.c.l.b16 %v359
    %v1346 = vunpack.c.l.b16 %v360
    %v1347 = vunpack.c.l.b16 %v361
    %v1348 = vunpack.c.l.b16 %v362
    %v1349 = vunpack.c.l.b16 %v363
    %v1350 = vunpack.c.l.b16 %v364
    %v1351 = vunpack.c.l.b16 %v365
    %v1352 = vunpack.c.l.b16 %v366
    %v1353 = vunpack.c.l.b16 %v367
    %v1354 = vunpack.c.l.b16 %v368
    %v1355 = vunpack.c.l.b16 %v369
    %v1356 = vunpack.c.l.b16 %v370
    %v1357 = vunpack.c.l.b16 %v371
    %v1358 = vunpack.c.l.b16 %v372
    %v1359 = vunpack.c.l.b16 %v373
    %v1360 = vunpack.c.l.b16 %v374
    %v1361 = vunpack.c.l.b16 %v375
    %v1362 = vunpack.c.l.b16 %v376
    %v1363 = vunpack.c.l.b16 %v377
    %v1364 = vunpack.c.l.b16 %v378
    %v1365 = vunpack.c.l.b16 %v379
    %v1366 = vunpack.c.l.b16 %v380
    %v1367 = vunpack.c.l.b16 %v381
    %v1368 = vunpack.c.l.b16 %v382
    %v1369 = vunpack.c.l.b16 %v383
    %v1370 = vunpack.c.l.b16 %v384
    %v1371 = vunpack.c.l.b16 %v385
    %v1372 = vunpack.c.l.b16 %v386
    %v1373 = vunpack.c.l.b16 %v387
    %v1374 = vunpack.c.l.b16 %v388
    %v1375 = vunpack.c.l.b16 %v389
    %v1376 = vunpack.c.l.b16 %v390
    %v1377 = vunpack.c.l.b16 %v391
    %v1378 = vunpack.c.l.b16 %v392
    %v1379 = vunpack.c.l.b16 %v393
    %v1380 = vunpack.c.l.b16 %v394
    %v1381 = vunpack.c.l.b16 %v395
    %v1382 = vunpack.c.l.b16 %v396
    %v1383 = vunpack.c.l.b16 %v397
    %v1384 = vunpack.c.l.b16 %v398
    %v1385 = vunpack.c.l.b16 %v399
    %v1386 = vunpack.c.l.b16 %v400
    %v1387 = vunpack.c.l.b16 %v401
    %v1388 = vunpack.c.l.b16 %v402
    %v1389 = vunpack.c.l.b16 %v403
    %v1390 = vunpack.c.l.b16 %v404
    %v1391 = vunpack.c.l.b16 %v405
    %v1392 = vunpack.c.l.b16 %v406
    %v1393 = vunpack.c.l.b16 %v407
    %v1394 = vunpack.c.l.b16 %v408
    %v1395 = vunpack.c.l.b16 %v409
    %v1396 = vpack.c.b16 %v1141, %v1140
    %v1397 = vpack.c.b16 %v1143, %v1142
    %v1398 = vpack.c.b16 %v1145, %v1144
    %v1399 = vpack.c.b16 %v1147, %v1146
    %v1400 = vpack.c.b16 %v1149, %v1148
    %v1401 = vpack.c.b16 %v1151, %v1150
    %v1402 = vpack.c.b16 %v1153, %v1152
    %v1403 = vpack.c.b16 %v1155, %v1154
    %v1404 = vpack.c.b16 %v1157, %v1156
    %v1405 = vpack.c.b16 %v1159, %v1158
    %v1406 = vpack.c.b16 %v1161, %v1160
    %v1407 = vpack.c.b16 %v1163, %v1162
    %v1408 = vpack.c.b16 %v1165, %v1164
    %v1409 = vpack.c.b16 %v1167, %v1166
    %v1410 = vpack.c.b16 %v1169, %v1168
    %v1411 = vpack.c.b16 %v1171, %v1170
    %v1412 = vpack.c.b16 %v1173, %v1172
    %v1413 = vpack.c.b16 %v1175, %v1174
    %v1414 = vpack.c.b16 %v1177, %v1176
    %v1415 = vpack.c.b16 %v1179, %v1178
    %v1416 = vpack.c.b16 %v1181, %v1180
    %v1417 = vpack.c.b16 %v1183, %v1182
    %v1418 = vpack.c.b16 %v1185, %v1184
    %v1419 = vpack.c.b16 %v1187, %v1186
    %v1420 = vpack.c.b16 %v1189, %v1188
    %v1421 = vpack.c.b16 %v1191, %v1190
    %v1422 = vpack.c.b16 %v1193, %v1192
    %v1423 = vpack.c.b16 %v1195, %v1194
    %v1424 = vpack.c.b16 %v1197, %v1196
    %v1425 = vpack.c.b16 %v1199, %v1198
    %v1426 = vpack.c.b16 %v1201, %v1200
    %v1427 = vpack.c.b16 %v1203, %v1202
    %v1428 = vpack.c.b16 %v1205, %v1204
    %v1429 = vpack.c.b16 %v1207, %v1206
    %v1430 = vpack.c.b16 %v1209, %v1208
    %v1431 = vpack.c.b16 %v1211, %v1210
    %v1432 = vpack.c.b16 %v1213, %v1212
    %v1433 = vpack.c.b16 %v1215, %v1214
    %v1434 = vpack.c.b16 %v1217, %v1216
    %v1435 = vpack.c.b16 %v1219, %v1218
    %v1436 = vpack.c.b16 %v1221, %v1220
    %v1437 = vpack.c.b16 %v1223, %v1222
    %v1438 = vpack.c.b16 %v1225, %v1224
    %v1439 = vpack.c.b16 %v1227, %v1226
    %v1440 = vpack.c.b16 %v1229, %v1228
    %v1441 = vpack.c.b16 %v1231, %v1230
    %v1442 = vpack.c.b16 %v1233, %v1232
    %v1443 = vpack.c.b16 %v1235, %v1234
    %v1444 = vpack.c.b16 %v1237, %v1236
    %v1445 = vpack.c.b16 %v1239, %v1238
    %v1446 = vpack.c.b16 %v1241, %v1240
    %v1447 = vpack.c.b16 %v1243, %v1242
    %v1448 = vpack.c.b16 %v1245, %v1244
    %v1449 = vpack.c.b16 %v1247, %v1246
    %v1450 = vpack.c.b16 %v1249, %v1248
    %v1451 = vpack.c.b16 %v1251, %v1250
    %v1452 = vpack.c.b16 %v1253, %v1252
    %v1453 = vpack.c.b16 %v1255, %v1254
    %v1454 = vpack.c.b16 %v1257, %v1256
    %v1455 = vpack.c.b16 %v1259, %v1258
    %v1456 = vpack.c.b16 %v1261, %v1260
    %v1457 = vpack.c.b16 %v1263, %v1262
    %v1458 = vpack.c.b16 %v1265, %v1264
    %v1459 = vpack.c.b16 %v1267, %v1266
    %v1460 = vpack.c.b16 %v1269, %v1268
    %v1461 = vpack.c.b16 %v1271, %v1270
    %v1462 = vpack.c.b16 %v1273, %v1272
    %v1463 = vpack.c.b16 %v1275, %v1274
    %v1464 = vpack.c.b16 %v1277, %v1276
    %v1465 = vpack.c.b16 %v1279, %v1278
    %v1466 = vpack.c.b16 %v1281, %v1280
    %v1467 = vpack.c.b16 %v1283, %v1282
    %v1468 = vpack.c.b16 %v1285, %v1284
    %v1469 = vpack.c.b16 %v1287, %v1286
    %v1470 = vpack.c.b16 %v1289, %v1288
    %v1471 = vpack.c.b16 %v1291, %v1290
    %v1472 = vpack.c.b16 %v1293, %v1292
    %v1473 = vpack.c.b16 %v1295, %v1294
    %v1474 = vpack.c.b16 %v1297, %v1296
    %v1475 = vpack.c.b16 %v1299, %v1298
    %v1476 = vpack.c.b16 %v1301, %v1300
    %v1477 = vpack.c.b16 %v1303, %v1302
    %v1478 = vpack.c.b16 %v1305, %v1304
    %v1479 = vpack.c.b16 %v1307, %v1306
    %v1480 = vpack.c.b16 %v1309, %v1308
    %v1481 = vpack.c.b16 %v1311, %v1310
    %v1482 = vpack.c.b16 %v1313, %v1312
    %v1483 = vpack.c.b16 %v1315, %v1314
    %v1484 = vpack.c.b16 %v1317, %v1316
    %v1485 = vpack.c.b16 %v1319, %v1318
    %v1486 = vpack.c.b16 %v1321, %v1320
    %v1487 = vpack.c.b16 %v1323, %v1322
    %v1488 = vpack.c.b16 %v1325, %v1324
    %v1489 = vpack.c.b16 %v1327, %v1326
    %v1490 = vpack.c.b16 %v1329, %v1328
    %v1491 = vpack.c.b16 %v1331, %v1330
    %v1492 = vpack.c.b16 %v1333, %v1332
    %v1493 = vpack.c.b16 %v1335, %v1334
    %v1494 = vpack.c.b16 %v1337, %v1336
    %v1495 = vpack.c.b16 %v1339, %v1338
    %v1496 = vpack.c.b16 %v1341, %v1340
    %v1497 = vpack.c.b16 %v1343, %v1342
    %v1498 = vpack.c.b16 %v1345, %v1344
    %v1499 = vpack.c.b16 %v1347, %v1346
    %v1500 = vpack.c.b16 %v1349, %v1348
    %v1501 = vpack.c.b16 %v1351, %v1350
    %v1502 = vpack.c.b16 %v1353, %v1352
    %v1503 = vpack.c.b16 %v1355, %v1354
    %v1504 = vpack.c.b16 %v1357, %v1356
    %v1505 = vpack.c.b16 %v1359, %v1358
    %v1506 = vpack.c.b16 %v1361, %v1360
    %v1507 = vpack.c.b16 %v1363, %v1362
    %v1508 = vpack.c.b16 %v1365, %v1364
    %v1509 = vpack.c.b16 %v1367, %v1366
    %v1510 = vpack.c.b16 %v1369, %v1368
    %v1511 = vpack.c.b16 %v1371, %v1370
    %v1512 = vpack.c.b16 %v1373, %v1372
    %v1513 = vpack.c.b16 %v1375, %v1374
    %v1514 = vpack.c.b16 %v1377, %v1376
    %v1515 = vpack.c.b16 %v1379, %v1378
    %v1516 = vpack.c.b16 %v1381, %v1380
    %v1517 = vpack.c.b16 %v1383, %v1382
    %v1518 = vpack.c.b16 %v1385, %v1384
    %v1519 = vpack.c.b16 %v1387, %v1386
    %v1520 = vpack.c.b16 %v1389, %v1388
    %v1521 = vpack.c.b16 %v1391, %v1390
    %v1522 = vpack.c.b16 %v1393, %v1392
    %v1523 = vpack.c.b16 %v1395, %v1394
    %1652 = vmatpush.bf16.msra.mxu0 %v1403
    %1653 = vmatpush.bf16.msra.mxu0 %v1402
    %1654 = vmatpush.bf16.msra.mxu0 %v1401
    %1655 = vmatpush.bf16.msra.mxu0 %v1400
    %1656 = vmatpush.bf16.msra.mxu0 %v1399
    %1657 = vmatpush.bf16.msra.mxu0 %v1398
    %1658 = vmatpush.bf16.msra.mxu0 %v1397
    %1659 = vmatpush.bf16.msra.mxu0 %v1396
    %1660 = vmatmul.bf16.gmra.mxu0 %v138
    %v1661 = vpop.f32.mrf.mxu0
    %v1662 = vadd.f32 %v881, %v1661
    %v1663 = vpop.f32.mrf.mxu0
    %1664 = vdwg.mxu0
    %1665 = vmatpush.bf16.msra.mxu0 %v1411
    %1666 = vmatpush.bf16.msra.mxu0 %v1410
    %1667 = vmatpush.bf16.msra.mxu0 %v1409
    %1668 = vmatpush.bf16.msra.mxu0 %v1408
    %1669 = vmatpush.bf16.msra.mxu0 %v1407
    %1670 = vmatpush.bf16.msra.mxu0 %v1406
    %1671 = vmatpush.bf16.msra.mxu0 %v1405
    %1672 = vmatpush.bf16.msra.mxu0 %v1404
    %1673 = vmatmul.bf16.gmra.mxu0 %v139
    %v1674 = vpop.f32.mrf.mxu0
    %v1675 = vadd.f32 %v1662, %v1674
    %v1676 = vpop.f32.mrf.mxu0
    %1677 = vdwg.mxu0
    %1678 = vmatpush.bf16.msra.mxu0 %v1419
    %1679 = vmatpush.bf16.msra.mxu0 %v1418
    %1680 = vmatpush.bf16.msra.mxu0 %v1417
    %1681 = vmatpush.bf16.msra.mxu0 %v1416
    %1682 = vmatpush.bf16.msra.mxu0 %v1415
    %1683 = vmatpush.bf16.msra.mxu0 %v1414
    %1684 = vmatpush.bf16.msra.mxu0 %v1413
    %1685 = vmatpush.bf16.msra.mxu0 %v1412
    %1686 = vmatmul.bf16.gmra.mxu0 %v140
    %v1687 = vpop.f32.mrf.mxu0
    %v1688 = vadd.f32 %v1675, %v1687
    %v1689 = vpop.f32.mrf.mxu0
    %1690 = vdwg.mxu0
    %1691 = vmatpush.bf16.msra.mxu0 %v1427
    %1692 = vmatpush.bf16.msra.mxu0 %v1426
    %1693 = vmatpush.bf16.msra.mxu0 %v1425
    %1694 = vmatpush.bf16.msra.mxu0 %v1424
    %1695 = vmatpush.bf16.msra.mxu0 %v1423
    %1696 = vmatpush.bf16.msra.mxu0 %v1422
    %1697 = vmatpush.bf16.msra.mxu0 %v1421
    %1698 = vmatpush.bf16.msra.mxu0 %v1420
    %1699 = vmatmul.bf16.gmra.mxu0 %v141
    %v1700 = vpop.f32.mrf.mxu0
    %v1701 = vadd.f32 %v1688, %v1700
    %v1702 = vpop.f32.mrf.mxu0
    %1703 = vdwg.mxu0
    %1704 = vmatpush.bf16.msra.mxu0 %v1435
    %1705 = vmatpush.bf16.msra.mxu0 %v1434
    %1706 = vmatpush.bf16.msra.mxu0 %v1433
    %1707 = vmatpush.bf16.msra.mxu0 %v1432
    %1708 = vmatpush.bf16.msra.mxu0 %v1431
    %1709 = vmatpush.bf16.msra.mxu0 %v1430
    %1710 = vmatpush.bf16.msra.mxu0 %v1429
    %1711 = vmatpush.bf16.msra.mxu0 %v1428
    %1712 = vmatmul.bf16.gmra.mxu0 %v142
    %v1713 = vpop.f32.mrf.mxu0
    %v1714 = vadd.f32 %v1701, %v1713
    %v1715 = vpop.f32.mrf.mxu0
    %1716 = vdwg.mxu0
    %1717 = vmatpush.bf16.msra.mxu0 %v1443
    %1718 = vmatpush.bf16.msra.mxu0 %v1442
    %1719 = vmatpush.bf16.msra.mxu0 %v1441
    %1720 = vmatpush.bf16.msra.mxu0 %v1440
    %1721 = vmatpush.bf16.msra.mxu0 %v1439
    %1722 = vmatpush.bf16.msra.mxu0 %v1438
    %1723 = vmatpush.bf16.msra.mxu0 %v1437
    %1724 = vmatpush.bf16.msra.mxu0 %v1436
    %1725 = vmatmul.bf16.gmra.mxu0 %v143
    %v1726 = vpop.f32.mrf.mxu0
    %v1727 = vadd.f32 %v1714, %v1726
    %v1728 = vpop.f32.mrf.mxu0
    %1729 = vdwg.mxu0
    %1730 = vmatpush.bf16.msra.mxu0 %v1451
    %1731 = vmatpush.bf16.msra.mxu0 %v1450
    %1732 = vmatpush.bf16.msra.mxu0 %v1449
    %1733 = vmatpush.bf16.msra.mxu0 %v1448
    %1734 = vmatpush.bf16.msra.mxu0 %v1447
    %1735 = vmatpush.bf16.msra.mxu0 %v1446
    %1736 = vmatpush.bf16.msra.mxu0 %v1445
    %1737 = vmatpush.bf16.msra.mxu0 %v1444
    %1738 = vmatmul.bf16.gmra.mxu0 %v144
    %v1739 = vpop.f32.mrf.mxu0
    %v1740 = vadd.f32 %v1727, %v1739
    %v1741 = vpop.f32.mrf.mxu0
    %1742 = vdwg.mxu0
    %1743 = vmatpush.bf16.msra.mxu0 %v1459
    %1744 = vmatpush.bf16.msra.mxu0 %v1458
    %1745 = vmatpush.bf16.msra.mxu0 %v1457
    %1746 = vmatpush.bf16.msra.mxu0 %v1456
    %1747 = vmatpush.bf16.msra.mxu0 %v1455
    %1748 = vmatpush.bf16.msra.mxu0 %v1454
    %1749 = vmatpush.bf16.msra.mxu0 %v1453
    %1750 = vmatpush.bf16.msra.mxu0 %v1452
    %1751 = vmatmul.bf16.gmra.mxu0 %v145
    %v1752 = vpop.f32.mrf.mxu0
    %v1753 = vadd.f32 %v1740, %v1752
    %v1754 = vpop.f32.mrf.mxu0
    %1755 = vdwg.mxu0
    %1756 = vmatpush.bf16.msra.mxu0 %v1467
    %1757 = vmatpush.bf16.msra.mxu0 %v1466
    %1758 = vmatpush.bf16.msra.mxu0 %v1465
    %1759 = vmatpush.bf16.msra.mxu0 %v1464
    %1760 = vmatpush.bf16.msra.mxu0 %v1463
    %1761 = vmatpush.bf16.msra.mxu0 %v1462
    %1762 = vmatpush.bf16.msra.mxu0 %v1461
    %1763 = vmatpush.bf16.msra.mxu0 %v1460
    %1764 = vmatmul.bf16.gmra.mxu0 %v146
    %v1765 = vpop.f32.mrf.mxu0
    %v1766 = vadd.f32 %v1753, %v1765
    %v1767 = vpop.f32.mrf.mxu0
    %1768 = vdwg.mxu0
    %1769 = vmatpush.bf16.msra.mxu0 %v1475
    %1770 = vmatpush.bf16.msra.mxu0 %v1474
    %1771 = vmatpush.bf16.msra.mxu0 %v1473
    %1772 = vmatpush.bf16.msra.mxu0 %v1472
    %1773 = vmatpush.bf16.msra.mxu0 %v1471
    %1774 = vmatpush.bf16.msra.mxu0 %v1470
    %1775 = vmatpush.bf16.msra.mxu0 %v1469
    %1776 = vmatpush.bf16.msra.mxu0 %v1468
    %1777 = vmatmul.bf16.gmra.mxu0 %v147
    %v1778 = vpop.f32.mrf.mxu0
    %v1779 = vadd.f32 %v1766, %v1778
    %v1780 = vpop.f32.mrf.mxu0
    %1781 = vdwg.mxu0
    %1782 = vmatpush.bf16.msra.mxu0 %v1483
    %1783 = vmatpush.bf16.msra.mxu0 %v1482
    %1784 = vmatpush.bf16.msra.mxu0 %v1481
    %1785 = vmatpush.bf16.msra.mxu0 %v1480
    %1786 = vmatpush.bf16.msra.mxu0 %v1479
    %1787 = vmatpush.bf16.msra.mxu0 %v1478
    %1788 = vmatpush.bf16.msra.mxu0 %v1477
    %1789 = vmatpush.bf16.msra.mxu0 %v1476
    %1790 = vmatmul.bf16.gmra.mxu0 %v148
    %v1791 = vpop.f32.mrf.mxu0
    %v1792 = vadd.f32 %v1779, %v1791
    %v1793 = vpop.f32.mrf.mxu0
    %1794 = vdwg.mxu0
    %1795 = vmatpush.bf16.msra.mxu0 %v1491
    %1796 = vmatpush.bf16.msra.mxu0 %v1490
    %1797 = vmatpush.bf16.msra.mxu0 %v1489
    %1798 = vmatpush.bf16.msra.mxu0 %v1488
    %1799 = vmatpush.bf16.msra.mxu0 %v1487
    %1800 = vmatpush.bf16.msra.mxu0 %v1486
    %1801 = vmatpush.bf16.msra.mxu0 %v1485
    %1802 = vmatpush.bf16.msra.mxu0 %v1484
    %1803 = vmatmul.bf16.gmra.mxu0 %v149
    %v1804 = vpop.f32.mrf.mxu0
    %v1805 = vadd.f32 %v1792, %v1804
    %v1806 = vpop.f32.mrf.mxu0
    %1807 = vdwg.mxu0
    %1808 = vmatpush.bf16.msra.mxu0 %v1499
    %1809 = vmatpush.bf16.msra.mxu0 %v1498
    %1810 = vmatpush.bf16.msra.mxu0 %v1497
    %1811 = vmatpush.bf16.msra.mxu0 %v1496
    %1812 = vmatpush.bf16.msra.mxu0 %v1495
    %1813 = vmatpush.bf16.msra.mxu0 %v1494
    %1814 = vmatpush.bf16.msra.mxu0 %v1493
    %1815 = vmatpush.bf16.msra.mxu0 %v1492
    %1816 = vmatmul.bf16.gmra.mxu0 %v150
    %v1817 = vpop.f32.mrf.mxu0
    %v1818 = vadd.f32 %v1805, %v1817
    %v1819 = vpop.f32.mrf.mxu0
    %1820 = vdwg.mxu0
    %1821 = vmatpush.bf16.msra.mxu0 %v1507
    %1822 = vmatpush.bf16.msra.mxu0 %v1506
    %1823 = vmatpush.bf16.msra.mxu0 %v1505
    %1824 = vmatpush.bf16.msra.mxu0 %v1504
    %1825 = vmatpush.bf16.msra.mxu0 %v1503
    %1826 = vmatpush.bf16.msra.mxu0 %v1502
    %1827 = vmatpush.bf16.msra.mxu0 %v1501
    %1828 = vmatpush.bf16.msra.mxu0 %v1500
    %1829 = vmatmul.bf16.gmra.mxu0 %v151
    %v1830 = vpop.f32.mrf.mxu0
    %v1831 = vadd.f32 %v1818, %v1830
    %v1832 = vpop.f32.mrf.mxu0
    %1833 = vdwg.mxu0
    %1834 = vmatpush.bf16.msra.mxu0 %v1515
    %1835 = vmatpush.bf16.msra.mxu0 %v1514
    %1836 = vmatpush.bf16.msra.mxu0 %v1513
    %1837 = vmatpush.bf16.msra.mxu0 %v1512
    %1838 = vmatpush.bf16.msra.mxu0 %v1511
    %1839 = vmatpush.bf16.msra.mxu0 %v1510
    %1840 = vmatpush.bf16.msra.mxu0 %v1509
    %1841 = vmatpush.bf16.msra.mxu0 %v1508
    %1842 = vmatmul.bf16.gmra.mxu0 %v152
    %v1843 = vpop.f32.mrf.mxu0
    %v1844 = vadd.f32 %v1831, %v1843
    %v1845 = vpop.f32.mrf.mxu0
    %1846 = vdwg.mxu0
    %1847 = vmatpush.bf16.msra.mxu0 %v1523
    %1848 = vmatpush.bf16.msra.mxu0 %v1522
    %1849 = vmatpush.bf16.msra.mxu0 %v1521
    %1850 = vmatpush.bf16.msra.mxu0 %v1520
    %1851 = vmatpush.bf16.msra.mxu0 %v1519
    %1852 = vmatpush.bf16.msra.mxu0 %v1518
    %1853 = vmatpush.bf16.msra.mxu0 %v1517
    %1854 = vmatpush.bf16.msra.mxu0 %v1516
    %1855 = vmatmul.bf16.gmra.mxu0 %v153
    %v1856 = vpop.f32.mrf.mxu0
    %v1857 = vadd.f32 %v1844, %v1856
    %v1858 = vpop.f32.mrf.mxu0
    %1859 = vdwg.mxu0
    %v1860 = vld [vmem:[#allocation7] sm:$0xff]
    %v1861 = vld [vmem:[#allocation11] sm:$0xff]
    %v1862 = vld [vmem:[#allocation11 + $0x8] sm:$0x3]
    %vm1863 = vcmask 80896
    %v1865 = vsel %vm1863, %v1860, 0
    %vm1867 = vcmask 1041408
    %v1869 = vsel %vm1867, %v1862, 0
    %1871 = vmatpush.msra.mxu0 0.0
    %1872 = vmatpush.msra.mxu0 0.0
    %1873 = vmatpush.msra.mxu0 0.0
    %1874 = vmatpush.msra.mxu0 0.0
    %1875 = vmatpush.msra.mxu0 0.0
    %1876 = vmatpush.msra.mxu0 0.0
    %1877 = vmatpush.msra.mxu0 0.0
    %1878 = vmatpush.msra.mxu0 0.0
    %1879 = vmatpush.msra.mxu0 0.0
    %1880 = vmatpush.msra.mxu0 0.0
    %1881 = vmatpush.msra.mxu0 0.0
    %1882 = vmatpush.msra.mxu0 0.0
    %1883 = vmatpush.msra.mxu0 0.0
    %1884 = vmatpush.msra.mxu0 0.0
    %1885 = vmatpush.msra.mxu0 %v1869
    %1886 = vmatpush.msra.mxu0 %v1861
    %1887 = vmatmul.f32.gmra.mxu0 %v1865
    %v1888 = vpop.f32.mrf.mxu0
    %v1889 = vadd.f32 0.0, %v1888
    %1890 = vdwg.mxu0
    %v1891 = vadd.f32 %v1857, %v1889
    %v1892 = vld [vmem:[%s6] sm:$0x1]
    %v1894 = vperm.slane %v1892, 0
    %v1896 = vadd.f32 %v1891, %v1894
    %v1897 = vmax.f32 %v1896, 0.0
    %v1898 = vld [vmem:[%s7] sm:$0x1]
    %v1900 = vperm.slane %v1898, 0
    %v1902 = vmul.f32 %v1897, %v1900
    %1903 = vadd.xlane.f32.xlu0 %v1902
    %v1904 = vpop.xlane.xlu0 %1903
    %v1905 = vld [vmem:[#allocation2] sm:$0x1]
    %v1907 = vperm.slane %v1905, 0
    %v1909 = vadd.f32 %v1904, %v1907
    %vm1910 = vcmask 7168
    %1911 = vst.msk [vmem:[%s9] sm:$0xff] %vm1910, %v1909
    // Predicated region
    $region62: #{tpu_custom_call.1} parent=1 // pred_check
      _
    $region63: #{tpu_custom_call.1} parent=1 // pred_check_branch
      %1913 = sbr.rel (0) target = $region65
    $region64: #{tpu_custom_call.1} parent=1 // pred_region
      _
    $region65: #{tpu_custom_call.1} parent=1 // pred_fallthru
      _
    // Predicated region
    $region66: #{tpu_custom_call.1} parent=1 // pred_check
      _
    $region67: #{tpu_custom_call.1} parent=1 // pred_check_branch
      %1915 = sbr.rel (0) target = $region69
    $region68: #{tpu_custom_call.1} parent=1 // pred_region
      _
    $region69: #{tpu_custom_call.1} parent=1 // pred_fallthru
      _
    %1916 = vsyncpa [#allocation4], 1
    %1917 = vsyncpa [#allocation6], 1
    %1918 = vsyncpa [#allocation9], 1
    %1919 = vsyncpa [#allocation12], 1

</llo_original>
